<compile_context>
chip_gen: v7x
topology: tpu7x:2x2x1
jax: 0.10.0
libtpu: 0.0.40
codegen_flags: <defaults>
</compile_context>

<pallas_src>
import functools

import jax
import jax.numpy as jnp
from jax.experimental import pallas as pl
from jax.experimental.pallas import tpu as pltpu

H = 32              # embedding dim (matches the hard-coded 32x32 D)
PACK = 4            # rows packed per 128-lane VMEM row (4 * 32 = 128 lanes)
TN_DEFAULT = 16384  # logical row tile (=> 4096 packed rows; sweepable upward
                    # on v6e/v7x with vmem_limit_bytes raised accordingly)
VMEM_LIMIT = 32 * 1024 * 1024


def _round_up(x, m):
    return ((x + m - 1) // m) * m


def _lindec_kernel(zi_ref, zj_ref, mblk_ref, gsum_ref, out_ref, *, mm_precision):
    # t[r, g*32:(g+1)*32] = Zi[row r*4+g] @ M      (block-diagonal M_blk)
    t = jnp.dot(zi_ref[...], mblk_ref[...],
                preferred_element_type=jnp.float32,
                precision=mm_precision)
    prod = t * zj_ref[...].astype(jnp.float32)
    # Per-32-lane-group sum via a (128,4) 0/1 matrix on the MXU (no XLU
    # cross-lane reduce, no sublane<->lane relayout). Output block is (tile,4).
    out_ref[...] = jnp.dot(prod, gsum_ref[...],
                           preferred_element_type=jnp.float32,
                           precision=jax.lax.Precision.HIGHEST)


def linear_dec_forward(zi, zj, d, r, *, tn=TN_DEFAULT, pack=PACK):
    """logits = (zi @ d @ r @ d * zj).sum(1).

    zi/zj may be float32 (strict parity, HIGHEST-precision matmul) or
    bfloat16 (half the HBM read traffic, native single-pass MXU matmul).
    """
    n, h = zi.shape
    assert h == H, f"expected embedding dim {H}, got {h}"
    assert zj.shape == zi.shape and zj.dtype == zi.dtype

    hi = jax.lax.Precision.HIGHEST
    in_dtype = zi.dtype
    stream_bf16 = in_dtype == jnp.bfloat16

    # Parameter chain hoisted out of the kernel: one tiny 32x32 product.
    m = jnp.dot(jnp.dot(d, r, precision=hi), d, precision=hi).astype(jnp.float32)
    # Block-diagonal M for the packed 128-lane layout, and the group-sum matrix.
    m_blk = jnp.kron(jnp.eye(pack, dtype=jnp.float32), m).astype(in_dtype)      # (128,128)
    gsum = jnp.kron(jnp.eye(pack, dtype=jnp.float32),
                    jnp.ones((H, 1), jnp.float32))                              # (128,4)

    # Packing needs n % pack == 0; pad at most (pack-1)=3 rows.
    # TODO(synk): fuse this tiny pad into the producer of Zi/Zj -- a standalone
    # pad still copies the inputs once in HBM when n % 4 != 0.
    rem = n % pack
    if rem:
        extra = pack - rem
        zi = jnp.pad(zi, ((0, extra), (0, 0)))
        zj = jnp.pad(zj, ((0, extra), (0, 0)))
    n_rows = zi.shape[0]
    n_p = n_rows // pack
    lanes = pack * H

    # Free views of the contiguous row-major data: lane-dense (n_p, 128).
    zi_p = zi.reshape(n_p, lanes)
    zj_p = zj.reshape(n_p, lanes)

    # Packed-row tile: multiple of 16 (covers bf16 sublane packing), no larger
    # than needed.  NO padding of n_p to a multiple of the tile -- the grid is
    # cdiv and Pallas masks the partial edge block (rows are independent).
    tn_p = max(16, min(tn // pack, _round_up(n_p, 16)))
    grid = (pl.cdiv(n_p, tn_p),)

    mm_precision = None if stream_bf16 else hi
    kernel = functools.partial(_lindec_kernel, mm_precision=mm_precision)

    out = pl.pallas_call(
        kernel,
        out_shape=jax.ShapeDtypeStruct((n_p, pack), jnp.float32),
        grid_spec=pltpu.PrefetchScalarGridSpec(
            num_scalar_prefetch=0,
            grid=grid,
            in_specs=[
                pl.BlockSpec((tn_p, lanes), lambda i: (i, 0)),    # Zi packed tile
                pl.BlockSpec((tn_p, lanes), lambda i: (i, 0)),    # Zj packed tile
                pl.BlockSpec((lanes, lanes), lambda i: (0, 0)),   # block-diag M (resident)
                pl.BlockSpec((lanes, pack), lambda i: (0, 0)),    # group-sum matrix (resident)
            ],
            out_specs=pl.BlockSpec((tn_p, pack), lambda i: (i, 0)),
        ),
        compiler_params=pltpu.CompilerParams(
            dimension_semantics=("parallel",),
            vmem_limit_bytes=VMEM_LIMIT),
    )(zi_p, zj_p, m_blk, gsum)

    # (n_p, 4) -> (n_rows,) is a free row-major reshape; slice off any pad rows.
    return out.reshape(n_rows)[:n]


if __name__ == "__main__":
    key = jax.random.PRNGKey(0)
    k_zi, k_zj, k_d, k_r, k_z = jax.random.split(key, 5)

    N = 300  # number of (i, j) node pairs -- deliberately NOT a multiple of 128

    # Deterministic synthetic "parameters" (no checkpoint load):
    # D ~ N(0, 0.01) as in torch.empty(32,32).normal_(mean=0, std=0.01)
    D = 0.01 * jax.random.normal(k_d, (H, H), dtype=jnp.float32)
    R = jax.random.normal(k_r, (H, H), dtype=jnp.float32)
    Z = jax.random.normal(k_z, (N, H), dtype=jnp.float32)  # stored by the module, unused in forward()

    Zi = jax.random.normal(k_zi, (N, H), dtype=jnp.float32)
    Zj = jax.random.normal(k_zj, (N, H), dtype=jnp.float32)

    # --- f32 path: strict parity with the PyTorch f32 module ---
    logits = jax.block_until_ready(linear_dec_forward(Zi, Zj, D, R))

    hi = jax.lax.Precision.HIGHEST
    m_ref = jnp.dot(jnp.dot(D, R, precision=hi), D, precision=hi)
    ref = jnp.sum(jnp.dot(Zi, m_ref, precision=hi) * Zj, axis=1)
    assert logits.shape == (N,)
    assert jnp.allclose(logits, ref, atol=1e-4, rtol=1e-4), "f32 path mismatch vs reference"

    # --- bf16 streaming path: caller supplies bf16 embeddings (halves HBM reads) ---
    logits_bf16 = jax.block_until_ready(
        linear_dec_forward(Zi.astype(jnp.bfloat16), Zj.astype(jnp.bfloat16), D, R))
    assert logits_bf16.shape == (N,)
    assert jnp.allclose(logits_bf16, ref, atol=1e-2, rtol=5e-2), "bf16 path mismatch vs reference"

    print("KERNEL_OK")
</pallas_src>

<mosaic_0001>
module attributes {stable_mosaic.version = 11 : i64} {
  func.func @_lindec_kernel(%arg0: i32, %arg1: memref<80x128xf32, #tpu.memory_space<vmem>>, %arg2: memref<80x128xf32, #tpu.memory_space<vmem>>, %arg3: memref<128x128xf32, #tpu.memory_space<vmem>>, %arg4: memref<128x4xf32, #tpu.memory_space<vmem>>, %arg5: memref<80x4xf32, #tpu.memory_space<vmem>>) attributes {dimension_semantics = [#tpu.dimension_semantics<parallel>], iteration_bounds = array<i64: 1>, scalar_prefetch = 0 : i64, scratch_operands = 0 : i64, tpu.core_type = #tpu.core_type<tc>, window_params = [{transform_indices = @transform_0, window_bounds = array<i64: 80, 128>}, {transform_indices = @transform_1, window_bounds = array<i64: 80, 128>}, {pipeline_mode = #tpu.pipeline_mode<synchronous>, transform_indices = @transform_2, window_bounds = array<i64: 128, 128>}, {pipeline_mode = #tpu.pipeline_mode<synchronous>, transform_indices = @transform_3, window_bounds = array<i64: 128, 4>}, {transform_indices = @transform_4, window_bounds = array<i64: 80, 4>}]} {
    %c0 = arith.constant 0 : index
    %c0_0 = arith.constant 0 : index
    %0 = vector.load %arg1[%c0, %c0_0] : memref<80x128xf32, #tpu.memory_space<vmem>>, vector<80x128xf32>
    %c0_1 = arith.constant 0 : index
    %c0_2 = arith.constant 0 : index
    %1 = vector.load %arg3[%c0_1, %c0_2] : memref<128x128xf32, #tpu.memory_space<vmem>>, vector<128x128xf32>
    %cst = arith.constant dense<0.000000e+00> : vector<80x128xf32>
    %2 = tpu.matmul %0, %1, %cst {dimension_numbers = #tpu.dot_dimension_numbers<[1], [0], [0], [1], [0, 0, 1, 1], [], []>, precision = #tpu.contract_precision<fp32>} : vector<80x128xf32>, vector<128x128xf32>, vector<80x128xf32> -> vector<80x128xf32>
    %c0_3 = arith.constant 0 : index
    %c0_4 = arith.constant 0 : index
    %3 = vector.load %arg2[%c0_3, %c0_4] : memref<80x128xf32, #tpu.memory_space<vmem>>, vector<80x128xf32>
    %4 = arith.mulf %2, %3 : vector<80x128xf32>
    %c0_5 = arith.constant 0 : index
    %c0_6 = arith.constant 0 : index
    %5 = vector.load %arg4[%c0_5, %c0_6] : memref<128x4xf32, #tpu.memory_space<vmem>>, vector<128x4xf32>
    %cst_7 = arith.constant dense<0.000000e+00> : vector<80x4xf32>
    %6 = tpu.matmul %4, %5, %cst_7 {dimension_numbers = #tpu.dot_dimension_numbers<[1], [0], [0], [1], [0, 0, 1, 1], [], []>, precision = #tpu.contract_precision<fp32>} : vector<80x128xf32>, vector<128x4xf32>, vector<80x4xf32> -> vector<80x4xf32>
    %c0_8 = arith.constant 0 : index
    %c0_9 = arith.constant 0 : index
    %7 = vector.load %arg5[%c0_8, %c0_9] : memref<80x4xf32, #tpu.memory_space<vmem>>, vector<80x4xf32>
    tpu.vector_store %arg5[%c0_8, %c0_9], %6 {strides = array<i32>} : memref<80x4xf32, #tpu.memory_space<vmem>>, vector<80x4xf32>,
    return
  }
  func.func @transform_0(%arg0: i32) -> (i32, i32) {
    %c0_i32 = arith.constant 0 : i32
    %c0_i32_0 = arith.constant 0 : i32
    return %arg0, %c0_i32 : i32, i32
  }
  func.func @transform_1(%arg0: i32) -> (i32, i32) {
    %c0_i32 = arith.constant 0 : i32
    %c0_i32_0 = arith.constant 0 : i32
    return %arg0, %c0_i32 : i32, i32
  }
  func.func @transform_2(%arg0: i32) -> (i32, i32) {
    %c0_i32 = arith.constant 0 : i32
    %c0_i32_0 = arith.constant 0 : i32
    %c0_i32_1 = arith.constant 0 : i32
    return %c0_i32, %c0_i32_0 : i32, i32
  }
  func.func @transform_3(%arg0: i32) -> (i32, i32) {
    %c0_i32 = arith.constant 0 : i32
    %c0_i32_0 = arith.constant 0 : i32
    %c0_i32_1 = arith.constant 0 : i32
    return %c0_i32, %c0_i32_0 : i32, i32
  }
  func.func @transform_4(%arg0: i32) -> (i32, i32) {
    %c0_i32 = arith.constant 0 : i32
    %c0_i32_0 = arith.constant 0 : i32
    return %arg0, %c0_i32 : i32, i32
  }
}

</mosaic_0001>

<llo_original>
// kernel: tpu_custom_call.1
$region0: #{tpu_custom_call.1}
  #allocation0 [shape = 'u32[]', space=smem, size = 0x4, offset = 0x4, fixed_abs, tag = 'smem constant byte address 0x4 - core index']
  #allocation1 [shape = 'u32[144,128]{1,0:T(1,128)}', space=vmem, size = 0x12000, scoped, tag = 'internal scratch']
  %s0 = inlined_call_operand.hbm [shape: f32[75,128], index: 0, kind: input, shape index: {}]
  %s1 = inlined_call_operand.hbm [shape: f32[75,128], index: 1, kind: input, shape index: {}]
  %s2 = inlined_call_operand.vmem [shape: f32[128,128], index: 2, kind: input, shape index: {}]
  %s3 = inlined_call_operand.vmem [shape: f32[128,4], index: 3, kind: input, shape index: {}]
  %s4 = inlined_call_operand.vmem [shape: f32[75,4], index: 4, kind: output, shape index: {}]
  %s5 = sld [smem:[#allocation0]]
  $region34: #{tpu_custom_call.1} parent=0
    _
  %s7 = ssub.s32 1, %s5
  %s8 = scalar_select 0, %s7, %s5
  $region1: #{tpu_custom_call.1} parent=0
    #allocation2 [shape = 'u8[40960]{0}', space=vmem, size = 0xa000, scoped, tag = 'input window, operand 0, single buffered']
    #allocation3 [shape = 's32[1]{0}', space=sflag, size = 0x4, scoped, tag = 'scoped memory for tpu_custom_call.1']
    #allocation4 [shape = 'u8[40960]{0}', space=vmem, size = 0xa000, scoped, tag = 'input window, operand 1, single buffered']
    #allocation5 [shape = 's32[1]{0}', space=sflag, size = 0x4, scoped, tag = 'scoped memory for tpu_custom_call.1']
    %9 = vsyncpa [#allocation3], 0
    %10 = vsyncpa [#allocation5], 0
    // Predicated region
    $region2: #{tpu_custom_call.1} parent=1 // pred_check
      _
    $region3: #{tpu_custom_call.1} parent=1 // pred_check_branch
      %12 = sbr.rel (0) target = $region5
    $region4: #{tpu_custom_call.1} parent=1 // pred_region
      %s14 = ssub.s32 1280, 1280
      %15 = vsyncadd [#allocation3], %s14
      %s16 = sshll.u32 [#allocation2], 4
      %s17 = int_to_ptr.vmem [resolvable:$true] %s16
      %22 = dma.hbm_to_vmem [thread:$0]  %s0, 1280, %s17, [#allocation3], 128, 128, 8
    $region5: #{tpu_custom_call.1} parent=1 // pred_fallthru
      _
    // Predicated region
    $region6: #{tpu_custom_call.1} parent=1 // pred_check
      _
    $region7: #{tpu_custom_call.1} parent=1 // pred_check_branch
      %24 = sbr.rel (0) target = $region9
    $region8: #{tpu_custom_call.1} parent=1 // pred_region
      %s26 = ssub.s32 1280, 1280
      %27 = vsyncadd [#allocation5], %s26
      %s28 = sshll.u32 [#allocation4], 4
      %s29 = int_to_ptr.vmem [resolvable:$true] %s28
      %34 = dma.hbm_to_vmem [thread:$0]  %s1, 1280, %s29, [#allocation5], 128, 128, 8
    $region9: #{tpu_custom_call.1} parent=1 // pred_fallthru
      _
    // Predicated region
    $region10: #{tpu_custom_call.1} parent=1 // pred_check
      _
    $region11: #{tpu_custom_call.1} parent=1 // pred_check_branch
      %36 = sbr.rel (0) target = $region13
    $region12: #{tpu_custom_call.1} parent=1 // pred_region
      _
    $region13: #{tpu_custom_call.1} parent=1 // pred_fallthru
      _
    // Predicated region
    $region14: #{tpu_custom_call.1} parent=1 // pred_check
      _
    $region15: #{tpu_custom_call.1} parent=1 // pred_check_branch
      %38 = sbr.rel (0) target = $region17
    $region16: #{tpu_custom_call.1} parent=1 // pred_region
      _
    $region17: #{tpu_custom_call.1} parent=1 // pred_fallthru
      _
    // Predicated region
    $region18: #{tpu_custom_call.1} parent=1 // pred_check
      _
    $region19: #{tpu_custom_call.1} parent=1 // pred_check_branch
      %40 = sbr.rel (0) target = $region21
    $region20: #{tpu_custom_call.1} parent=1 // pred_region
      %41 = dma.done [#allocation3], 1280
    $region21: #{tpu_custom_call.1} parent=1 // pred_fallthru
      _
    // Predicated region
    $region22: #{tpu_custom_call.1} parent=1 // pred_check
      _
    $region23: #{tpu_custom_call.1} parent=1 // pred_check_branch
      %43 = sbr.rel (0) target = $region25
    $region24: #{tpu_custom_call.1} parent=1 // pred_region
      %44 = dma.done [#allocation5], 1280
    $region25: #{tpu_custom_call.1} parent=1 // pred_fallthru
      _
    %v45 = vld [vmem:[#allocation2] sm:$0xff]
    %v46 = vld [vmem:[#allocation2 + $0x8] sm:$0xff]
    %v47 = vld [vmem:[#allocation2 + $0x10] sm:$0xff]
    %v48 = vld [vmem:[#allocation2 + $0x18] sm:$0xff]
    %v49 = vld [vmem:[#allocation2 + $0x20] sm:$0xff]
    %v50 = vld [vmem:[#allocation2 + $0x28] sm:$0xff]
    %v51 = vld [vmem:[#allocation2 + $0x30] sm:$0xff]
    %v52 = vld [vmem:[#allocation2 + $0x38] sm:$0xff]
    %v53 = vld [vmem:[#allocation2 + $0x40] sm:$0xff]
    %v54 = vld [vmem:[#allocation2 + $0x48] sm:$0xff]
    %v55 = vld [vmem:[%s2] sm:$0xff]
    %v56 = vld [vmem:[%s2 + $0x8] sm:$0xff]
    %v57 = vld [vmem:[%s2 + $0x10] sm:$0xff]
    %v58 = vld [vmem:[%s2 + $0x18] sm:$0xff]
    %v59 = vld [vmem:[%s2 + $0x20] sm:$0xff]
    %v60 = vld [vmem:[%s2 + $0x28] sm:$0xff]
    %v61 = vld [vmem:[%s2 + $0x30] sm:$0xff]
    %v62 = vld [vmem:[%s2 + $0x38] sm:$0xff]
    %v63 = vld [vmem:[%s2 + $0x40] sm:$0xff]
    %v64 = vld [vmem:[%s2 + $0x48] sm:$0xff]
    %v65 = vld [vmem:[%s2 + $0x50] sm:$0xff]
    %v66 = vld [vmem:[%s2 + $0x58] sm:$0xff]
    %v67 = vld [vmem:[%s2 + $0x60] sm:$0xff]
    %v68 = vld [vmem:[%s2 + $0x68] sm:$0xff]
    %v69 = vld [vmem:[%s2 + $0x70] sm:$0xff]
    %v70 = vld [vmem:[%s2 + $0x78] sm:$0xff]
    %71 = vmatprep.subr.mxu0 0.0
    %v72 = vand.u32 %v55, 4294901760
    %73 = vmatpush1.msra.mxu0 %v72
    %74 = vmatprep.subr.mxu0 0.0
    %v75 = vand.u32 %v56, 4294901760
    %76 = vmatpush1.msra.mxu0 %v75
    %77 = vmatprep.subr.mxu0 0.0
    %v78 = vand.u32 %v57, 4294901760
    %79 = vmatpush1.msra.mxu0 %v78
    %80 = vmatprep.subr.mxu0 0.0
    %v81 = vand.u32 %v58, 4294901760
    %82 = vmatpush1.msra.mxu0 %v81
    %83 = vmatprep.subr.mxu0 0.0
    %v84 = vand.u32 %v59, 4294901760
    %85 = vmatpush1.msra.mxu0 %v84
    %86 = vmatprep.subr.mxu0 0.0
    %v87 = vand.u32 %v60, 4294901760
    %88 = vmatpush1.msra.mxu0 %v87
    %89 = vmatprep.subr.mxu0 0.0
    %v90 = vand.u32 %v61, 4294901760
    %91 = vmatpush1.msra.mxu0 %v90
    %92 = vmatprep.subr.mxu0 0.0
    %v93 = vand.u32 %v62, 4294901760
    %94 = vmatpush1.msra.mxu0 %v93
    %95 = vmatprep.subr.mxu0 0.0
    %v96 = vand.u32 %v63, 4294901760
    %97 = vmatpush1.msra.mxu0 %v96
    %98 = vmatprep.subr.mxu0 0.0
    %v99 = vand.u32 %v64, 4294901760
    %100 = vmatpush1.msra.mxu0 %v99
    %101 = vmatprep.subr.mxu0 0.0
    %v102 = vand.u32 %v65, 4294901760
    %103 = vmatpush1.msra.mxu0 %v102
    %104 = vmatprep.subr.mxu0 0.0
    %v105 = vand.u32 %v66, 4294901760
    %106 = vmatpush1.msra.mxu0 %v105
    %107 = vmatprep.subr.mxu0 0.0
    %v108 = vand.u32 %v67, 4294901760
    %109 = vmatpush1.msra.mxu0 %v108
    %110 = vmatprep.subr.mxu0 0.0
    %v111 = vand.u32 %v68, 4294901760
    %112 = vmatpush1.msra.mxu0 %v111
    %113 = vmatprep.subr.mxu0 0.0
    %v114 = vand.u32 %v69, 4294901760
    %115 = vmatpush1.msra.mxu0 %v114
    %116 = vmatprep.subr.mxu0 0.0
    %v117 = vand.u32 %v70, 4294901760
    %118 = vmatpush1.msra.mxu0 %v117
    %119 = vmatprep.subr.mxu0 0.0
    %120 = vmatpush1.msra.mxu0 0.0
    %121 = vmatprep.subr.mxu0 0.0
    %122 = vmatpush1.msra.mxu0 0.0
    %123 = vmatprep.subr.mxu0 0.0
    %124 = vmatpush1.msra.mxu0 0.0
    %125 = vmatprep.subr.mxu0 0.0
    %126 = vmatpush1.msra.mxu0 0.0
    %127 = vmatprep.subr.mxu0 0.0
    %128 = vmatpush1.msra.mxu0 0.0
    %129 = vmatprep.subr.mxu0 0.0
    %130 = vmatpush1.msra.mxu0 0.0
    %131 = vmatprep.subr.mxu0 0.0
    %132 = vmatpush1.msra.mxu0 0.0
    %133 = vmatprep.subr.mxu0 0.0
    %134 = vmatpush1.msra.mxu0 0.0
    %135 = vmatprep.subr.mxu0 0.0
    %136 = vmatpush1.msra.mxu0 0.0
    %137 = vmatprep.subr.mxu0 0.0
    %138 = vmatpush1.msra.mxu0 0.0
    %139 = vmatprep.subr.mxu0 0.0
    %140 = vmatpush1.msra.mxu0 0.0
    %141 = vmatprep.subr.mxu0 0.0
    %142 = vmatpush1.msra.mxu0 0.0
    %143 = vmatprep.subr.mxu0 0.0
    %144 = vmatpush1.msra.mxu0 0.0
    %145 = vmatprep.subr.mxu0 0.0
    %146 = vmatpush1.msra.mxu0 0.0
    %147 = vmatprep.subr.mxu0 0.0
    %148 = vmatpush1.msra.mxu0 0.0
    %149 = vmatprep.subr.mxu0 0.0
    %150 = vmatpush1.msra.mxu0 0.0
    %151 = vmatprep.mubr.f32.mxu0 0.0
    %v152 = vand.u32 %v45, 4294901760
    %v153 = vsub.f32 %v45, %v152
    %v154 = vand.u32 %v153, 4294901760
    %v155 = vsub.f32 %v153, %v154
    %v156 = vand.u32 %v155, 4294901760
    %157 = vmatmul.mubr.f32.gmra.mrb[0].mxu0 %v156
    %v158 = vpop.f32.mrb[0].mxu0
    %v159 = vadd.f32 0.0, %v158
    %v160 = vpop.f32.mrb[0].mxu0
    %161 = vmatprep.mubr.f32.mxu0 0.0
    %v162 = vand.u32 %v46, 4294901760
    %v163 = vsub.f32 %v46, %v162
    %v164 = vand.u32 %v163, 4294901760
    %v165 = vsub.f32 %v163, %v164
    %v166 = vand.u32 %v165, 4294901760
    %167 = vmatmul.mubr.f32.gmra.mrb[0].mxu0 %v166
    %v168 = vpop.f32.mrb[0].mxu0
    %v169 = vadd.f32 0.0, %v168
    %v170 = vpop.f32.mrb[0].mxu0
    %171 = vmatprep.mubr.f32.mxu0 0.0
    %v172 = vand.u32 %v47, 4294901760
    %v173 = vsub.f32 %v47, %v172
    %v174 = vand.u32 %v173, 4294901760
    %v175 = vsub.f32 %v173, %v174
    %v176 = vand.u32 %v175, 4294901760
    %177 = vmatmul.mubr.f32.gmra.mrb[0].mxu0 %v176
    %v178 = vpop.f32.mrb[0].mxu0
    %v179 = vadd.f32 0.0, %v178
    %v180 = vpop.f32.mrb[0].mxu0
    %181 = vmatprep.mubr.f32.mxu0 0.0
    %v182 = vand.u32 %v48, 4294901760
    %v183 = vsub.f32 %v48, %v182
    %v184 = vand.u32 %v183, 4294901760
    %v185 = vsub.f32 %v183, %v184
    %v186 = vand.u32 %v185, 4294901760
    %187 = vmatmul.mubr.f32.gmra.mrb[0].mxu0 %v186
    %v188 = vpop.f32.mrb[0].mxu0
    %v189 = vadd.f32 0.0, %v188
    %v190 = vpop.f32.mrb[0].mxu0
    %191 = vmatprep.mubr.f32.mxu0 0.0
    %v192 = vand.u32 %v49, 4294901760
    %v193 = vsub.f32 %v49, %v192
    %v194 = vand.u32 %v193, 4294901760
    %v195 = vsub.f32 %v193, %v194
    %v196 = vand.u32 %v195, 4294901760
    %197 = vmatmul.mubr.f32.gmra.mrb[0].mxu0 %v196
    %v198 = vpop.f32.mrb[0].mxu0
    %v199 = vadd.f32 0.0, %v198
    %v200 = vpop.f32.mrb[0].mxu0
    %201 = vmatprep.mubr.f32.mxu0 0.0
    %v202 = vand.u32 %v50, 4294901760
    %v203 = vsub.f32 %v50, %v202
    %v204 = vand.u32 %v203, 4294901760
    %v205 = vsub.f32 %v203, %v204
    %v206 = vand.u32 %v205, 4294901760
    %207 = vmatmul.mubr.f32.gmra.mrb[0].mxu0 %v206
    %v208 = vpop.f32.mrb[0].mxu0
    %v209 = vadd.f32 0.0, %v208
    %v210 = vpop.f32.mrb[0].mxu0
    %211 = vmatprep.mubr.f32.mxu0 0.0
    %v212 = vand.u32 %v51, 4294901760
    %v213 = vsub.f32 %v51, %v212
    %v214 = vand.u32 %v213, 4294901760
    %v215 = vsub.f32 %v213, %v214
    %v216 = vand.u32 %v215, 4294901760
    %217 = vmatmul.mubr.f32.gmra.mrb[0].mxu0 %v216
    %v218 = vpop.f32.mrb[0].mxu0
    %v219 = vadd.f32 0.0, %v218
    %v220 = vpop.f32.mrb[0].mxu0
    %221 = vmatprep.mubr.f32.mxu0 0.0
    %v222 = vand.u32 %v52, 4294901760
    %v223 = vsub.f32 %v52, %v222
    %v224 = vand.u32 %v223, 4294901760
    %v225 = vsub.f32 %v223, %v224
    %v226 = vand.u32 %v225, 4294901760
    %227 = vmatmul.mubr.f32.gmra.mrb[0].mxu0 %v226
    %v228 = vpop.f32.mrb[0].mxu0
    %v229 = vadd.f32 0.0, %v228
    %v230 = vpop.f32.mrb[0].mxu0
    %231 = vmatprep.mubr.f32.mxu0 0.0
    %v232 = vand.u32 %v53, 4294901760
    %v233 = vsub.f32 %v53, %v232
    %v234 = vand.u32 %v233, 4294901760
    %v235 = vsub.f32 %v233, %v234
    %v236 = vand.u32 %v235, 4294901760
    %237 = vmatmul.mubr.f32.gmra.mrb[0].mxu0 %v236
    %v238 = vpop.f32.mrb[0].mxu0
    %v239 = vadd.f32 0.0, %v238
    %v240 = vpop.f32.mrb[0].mxu0
    %241 = vmatprep.mubr.f32.mxu0 0.0
    %v242 = vand.u32 %v54, 4294901760
    %v243 = vsub.f32 %v54, %v242
    %v244 = vand.u32 %v243, 4294901760
    %v245 = vsub.f32 %v243, %v244
    %v246 = vand.u32 %v245, 4294901760
    %247 = vmatmul.mubr.f32.gmra.mrb[0].mxu0 %v246
    %v248 = vpop.f32.mrb[0].mxu0
    %v249 = vadd.f32 0.0, %v248
    %v250 = vpop.f32.mrb[0].mxu0
    %251 = vdwg.mxu0
    %252 = vmatprep.subr.mxu0 0.0
    %v253 = vand.u32 %v55, 4294901760
    %v254 = vsub.f32 %v55, %v253
    %v255 = vand.u32 %v254, 4294901760
    %v256 = vsub.f32 %v254, %v255
    %v257 = vand.u32 %v256, 4294901760
    %258 = vmatpush1.msra.mxu0 %v257
    %259 = vmatprep.subr.mxu0 0.0
    %v260 = vand.u32 %v56, 4294901760
    %v261 = vsub.f32 %v56, %v260
    %v262 = vand.u32 %v261, 4294901760
    %v263 = vsub.f32 %v261, %v262
    %v264 = vand.u32 %v263, 4294901760
    %265 = vmatpush1.msra.mxu0 %v264
    %266 = vmatprep.subr.mxu0 0.0
    %v267 = vand.u32 %v57, 4294901760
    %v268 = vsub.f32 %v57, %v267
    %v269 = vand.u32 %v268, 4294901760
    %v270 = vsub.f32 %v268, %v269
    %v271 = vand.u32 %v270, 4294901760
    %272 = vmatpush1.msra.mxu0 %v271
    %273 = vmatprep.subr.mxu0 0.0
    %v274 = vand.u32 %v58, 4294901760
    %v275 = vsub.f32 %v58, %v274
    %v276 = vand.u32 %v275, 4294901760
    %v277 = vsub.f32 %v275, %v276
    %v278 = vand.u32 %v277, 4294901760
    %279 = vmatpush1.msra.mxu0 %v278
    %280 = vmatprep.subr.mxu0 0.0
    %v281 = vand.u32 %v59, 4294901760
    %v282 = vsub.f32 %v59, %v281
    %v283 = vand.u32 %v282, 4294901760
    %v284 = vsub.f32 %v282, %v283
    %v285 = vand.u32 %v284, 4294901760
    %286 = vmatpush1.msra.mxu0 %v285
    %287 = vmatprep.subr.mxu0 0.0
    %v288 = vand.u32 %v60, 4294901760
    %v289 = vsub.f32 %v60, %v288
    %v290 = vand.u32 %v289, 4294901760
    %v291 = vsub.f32 %v289, %v290
    %v292 = vand.u32 %v291, 4294901760
    %293 = vmatpush1.msra.mxu0 %v292
    %294 = vmatprep.subr.mxu0 0.0
    %v295 = vand.u32 %v61, 4294901760
    %v296 = vsub.f32 %v61, %v295
    %v297 = vand.u32 %v296, 4294901760
    %v298 = vsub.f32 %v296, %v297
    %v299 = vand.u32 %v298, 4294901760
    %300 = vmatpush1.msra.mxu0 %v299
    %301 = vmatprep.subr.mxu0 0.0
    %v302 = vand.u32 %v62, 4294901760
    %v303 = vsub.f32 %v62, %v302
    %v304 = vand.u32 %v303, 4294901760
    %v305 = vsub.f32 %v303, %v304
    %v306 = vand.u32 %v305, 4294901760
    %307 = vmatpush1.msra.mxu0 %v306
    %308 = vmatprep.subr.mxu0 0.0
    %v309 = vand.u32 %v63, 4294901760
    %v310 = vsub.f32 %v63, %v309
    %v311 = vand.u32 %v310, 4294901760
    %v312 = vsub.f32 %v310, %v311
    %v313 = vand.u32 %v312, 4294901760
    %314 = vmatpush1.msra.mxu0 %v313
    %315 = vmatprep.subr.mxu0 0.0
    %v316 = vand.u32 %v64, 4294901760
    %v317 = vsub.f32 %v64, %v316
    %v318 = vand.u32 %v317, 4294901760
    %v319 = vsub.f32 %v317, %v318
    %v320 = vand.u32 %v319, 4294901760
    %321 = vmatpush1.msra.mxu0 %v320
    %322 = vmatprep.subr.mxu0 0.0
    %v323 = vand.u32 %v65, 4294901760
    %v324 = vsub.f32 %v65, %v323
    %v325 = vand.u32 %v324, 4294901760
    %v326 = vsub.f32 %v324, %v325
    %v327 = vand.u32 %v326, 4294901760
    %328 = vmatpush1.msra.mxu0 %v327
    %329 = vmatprep.subr.mxu0 0.0
    %v330 = vand.u32 %v66, 4294901760
    %v331 = vsub.f32 %v66, %v330
    %v332 = vand.u32 %v331, 4294901760
    %v333 = vsub.f32 %v331, %v332
    %v334 = vand.u32 %v333, 4294901760
    %335 = vmatpush1.msra.mxu0 %v334
    %336 = vmatprep.subr.mxu0 0.0
    %v337 = vand.u32 %v67, 4294901760
    %v338 = vsub.f32 %v67, %v337
    %v339 = vand.u32 %v338, 4294901760
    %v340 = vsub.f32 %v338, %v339
    %v341 = vand.u32 %v340, 4294901760
    %342 = vmatpush1.msra.mxu0 %v341
    %343 = vmatprep.subr.mxu0 0.0
    %v344 = vand.u32 %v68, 4294901760
    %v345 = vsub.f32 %v68, %v344
    %v346 = vand.u32 %v345, 4294901760
    %v347 = vsub.f32 %v345, %v346
    %v348 = vand.u32 %v347, 4294901760
    %349 = vmatpush1.msra.mxu0 %v348
    %350 = vmatprep.subr.mxu0 0.0
    %v351 = vand.u32 %v69, 4294901760
    %v352 = vsub.f32 %v69, %v351
    %v353 = vand.u32 %v352, 4294901760
    %v354 = vsub.f32 %v352, %v353
    %v355 = vand.u32 %v354, 4294901760
    %356 = vmatpush1.msra.mxu0 %v355
    %357 = vmatprep.subr.mxu0 0.0
    %v358 = vand.u32 %v70, 4294901760
    %v359 = vsub.f32 %v70, %v358
    %v360 = vand.u32 %v359, 4294901760
    %v361 = vsub.f32 %v359, %v360
    %v362 = vand.u32 %v361, 4294901760
    %363 = vmatpush1.msra.mxu0 %v362
    %364 = vmatprep.subr.mxu0 0.0
    %365 = vmatpush1.msra.mxu0 0.0
    %366 = vmatprep.subr.mxu0 0.0
    %367 = vmatpush1.msra.mxu0 0.0
    %368 = vmatprep.subr.mxu0 0.0
    %369 = vmatpush1.msra.mxu0 0.0
    %370 = vmatprep.subr.mxu0 0.0
    %371 = vmatpush1.msra.mxu0 0.0
    %372 = vmatprep.subr.mxu0 0.0
    %373 = vmatpush1.msra.mxu0 0.0
    %374 = vmatprep.subr.mxu0 0.0
    %375 = vmatpush1.msra.mxu0 0.0
    %376 = vmatprep.subr.mxu0 0.0
    %377 = vmatpush1.msra.mxu0 0.0
    %378 = vmatprep.subr.mxu0 0.0
    %379 = vmatpush1.msra.mxu0 0.0
    %380 = vmatprep.subr.mxu0 0.0
    %381 = vmatpush1.msra.mxu0 0.0
    %382 = vmatprep.subr.mxu0 0.0
    %383 = vmatpush1.msra.mxu0 0.0
    %384 = vmatprep.subr.mxu0 0.0
    %385 = vmatpush1.msra.mxu0 0.0
    %386 = vmatprep.subr.mxu0 0.0
    %387 = vmatpush1.msra.mxu0 0.0
    %388 = vmatprep.subr.mxu0 0.0
    %389 = vmatpush1.msra.mxu0 0.0
    %390 = vmatprep.subr.mxu0 0.0
    %391 = vmatpush1.msra.mxu0 0.0
    %392 = vmatprep.subr.mxu0 0.0
    %393 = vmatpush1.msra.mxu0 0.0
    %394 = vmatprep.subr.mxu0 0.0
    %395 = vmatpush1.msra.mxu0 0.0
    %396 = vmatprep.mubr.f32.mxu0 0.0
    %v397 = vand.u32 %v45, 4294901760
    %398 = vmatmul.mubr.f32.gmra.mrb[0].mxu0 %v397
    %v399 = vpop.f32.mrb[0].mxu0
    %v400 = vadd.f32 %v159, %v399
    %v401 = vpop.f32.mrb[0].mxu0
    %402 = vmatprep.mubr.f32.mxu0 0.0
    %v403 = vand.u32 %v46, 4294901760
    %404 = vmatmul.mubr.f32.gmra.mrb[0].mxu0 %v403
    %v405 = vpop.f32.mrb[0].mxu0
    %v406 = vadd.f32 %v169, %v405
    %v407 = vpop.f32.mrb[0].mxu0
    %408 = vmatprep.mubr.f32.mxu0 0.0
    %v409 = vand.u32 %v47, 4294901760
    %410 = vmatmul.mubr.f32.gmra.mrb[0].mxu0 %v409
    %v411 = vpop.f32.mrb[0].mxu0
    %v412 = vadd.f32 %v179, %v411
    %v413 = vpop.f32.mrb[0].mxu0
    %414 = vmatprep.mubr.f32.mxu0 0.0
    %v415 = vand.u32 %v48, 4294901760
    %416 = vmatmul.mubr.f32.gmra.mrb[0].mxu0 %v415
    %v417 = vpop.f32.mrb[0].mxu0
    %v418 = vadd.f32 %v189, %v417
    %v419 = vpop.f32.mrb[0].mxu0
    %420 = vmatprep.mubr.f32.mxu0 0.0
    %v421 = vand.u32 %v49, 4294901760
    %422 = vmatmul.mubr.f32.gmra.mrb[0].mxu0 %v421
    %v423 = vpop.f32.mrb[0].mxu0
    %v424 = vadd.f32 %v199, %v423
    %v425 = vpop.f32.mrb[0].mxu0
    %426 = vmatprep.mubr.f32.mxu0 0.0
    %v427 = vand.u32 %v50, 4294901760
    %428 = vmatmul.mubr.f32.gmra.mrb[0].mxu0 %v427
    %v429 = vpop.f32.mrb[0].mxu0
    %v430 = vadd.f32 %v209, %v429
    %v431 = vpop.f32.mrb[0].mxu0
    %432 = vmatprep.mubr.f32.mxu0 0.0
    %v433 = vand.u32 %v51, 4294901760
    %434 = vmatmul.mubr.f32.gmra.mrb[0].mxu0 %v433
    %v435 = vpop.f32.mrb[0].mxu0
    %v436 = vadd.f32 %v219, %v435
    %v437 = vpop.f32.mrb[0].mxu0
    %438 = vmatprep.mubr.f32.mxu0 0.0
    %v439 = vand.u32 %v52, 4294901760
    %440 = vmatmul.mubr.f32.gmra.mrb[0].mxu0 %v439
    %v441 = vpop.f32.mrb[0].mxu0
    %v442 = vadd.f32 %v229, %v441
    %v443 = vpop.f32.mrb[0].mxu0
    %444 = vmatprep.mubr.f32.mxu0 0.0
    %v445 = vand.u32 %v53, 4294901760
    %446 = vmatmul.mubr.f32.gmra.mrb[0].mxu0 %v445
    %v447 = vpop.f32.mrb[0].mxu0
    %v448 = vadd.f32 %v239, %v447
    %v449 = vpop.f32.mrb[0].mxu0
    %450 = vmatprep.mubr.f32.mxu0 0.0
    %v451 = vand.u32 %v54, 4294901760
    %452 = vmatmul.mubr.f32.gmra.mrb[0].mxu0 %v451
    %v453 = vpop.f32.mrb[0].mxu0
    %v454 = vadd.f32 %v249, %v453
    %v455 = vpop.f32.mrb[0].mxu0
    %456 = vdwg.mxu0
    %457 = vmatprep.subr.mxu0 0.0
    %v458 = vand.u32 %v55, 4294901760
    %v459 = vsub.f32 %v55, %v458
    %460 = vmatpush1.msra.mxu0 %v459
    %461 = vmatprep.subr.mxu0 0.0
    %v462 = vand.u32 %v56, 4294901760
    %v463 = vsub.f32 %v56, %v462
    %464 = vmatpush1.msra.mxu0 %v463
    %465 = vmatprep.subr.mxu0 0.0
    %v466 = vand.u32 %v57, 4294901760
    %v467 = vsub.f32 %v57, %v466
    %468 = vmatpush1.msra.mxu0 %v467
    %469 = vmatprep.subr.mxu0 0.0
    %v470 = vand.u32 %v58, 4294901760
    %v471 = vsub.f32 %v58, %v470
    %472 = vmatpush1.msra.mxu0 %v471
    %473 = vmatprep.subr.mxu0 0.0
    %v474 = vand.u32 %v59, 4294901760
    %v475 = vsub.f32 %v59, %v474
    %476 = vmatpush1.msra.mxu0 %v475
    %477 = vmatprep.subr.mxu0 0.0
    %v478 = vand.u32 %v60, 4294901760
    %v479 = vsub.f32 %v60, %v478
    %480 = vmatpush1.msra.mxu0 %v479
    %481 = vmatprep.subr.mxu0 0.0
    %v482 = vand.u32 %v61, 4294901760
    %v483 = vsub.f32 %v61, %v482
    %484 = vmatpush1.msra.mxu0 %v483
    %485 = vmatprep.subr.mxu0 0.0
    %v486 = vand.u32 %v62, 4294901760
    %v487 = vsub.f32 %v62, %v486
    %488 = vmatpush1.msra.mxu0 %v487
    %489 = vmatprep.subr.mxu0 0.0
    %v490 = vand.u32 %v63, 4294901760
    %v491 = vsub.f32 %v63, %v490
    %492 = vmatpush1.msra.mxu0 %v491
    %493 = vmatprep.subr.mxu0 0.0
    %v494 = vand.u32 %v64, 4294901760
    %v495 = vsub.f32 %v64, %v494
    %496 = vmatpush1.msra.mxu0 %v495
    %497 = vmatprep.subr.mxu0 0.0
    %v498 = vand.u32 %v65, 4294901760
    %v499 = vsub.f32 %v65, %v498
    %500 = vmatpush1.msra.mxu0 %v499
    %501 = vmatprep.subr.mxu0 0.0
    %v502 = vand.u32 %v66, 4294901760
    %v503 = vsub.f32 %v66, %v502
    %504 = vmatpush1.msra.mxu0 %v503
    %505 = vmatprep.subr.mxu0 0.0
    %v506 = vand.u32 %v67, 4294901760
    %v507 = vsub.f32 %v67, %v506
    %508 = vmatpush1.msra.mxu0 %v507
    %509 = vmatprep.subr.mxu0 0.0
    %v510 = vand.u32 %v68, 4294901760
    %v511 = vsub.f32 %v68, %v510
    %512 = vmatpush1.msra.mxu0 %v511
    %513 = vmatprep.subr.mxu0 0.0
    %v514 = vand.u32 %v69, 4294901760
    %v515 = vsub.f32 %v69, %v514
    %516 = vmatpush1.msra.mxu0 %v515
    %517 = vmatprep.subr.mxu0 0.0
    %v518 = vand.u32 %v70, 4294901760
    %v519 = vsub.f32 %v70, %v518
    %520 = vmatpush1.msra.mxu0 %v519
    %521 = vmatprep.subr.mxu0 0.0
    %522 = vmatpush1.msra.mxu0 0.0
    %523 = vmatprep.subr.mxu0 0.0
    %524 = vmatpush1.msra.mxu0 0.0
    %525 = vmatprep.subr.mxu0 0.0
    %526 = vmatpush1.msra.mxu0 0.0
    %527 = vmatprep.subr.mxu0 0.0
    %528 = vmatpush1.msra.mxu0 0.0
    %529 = vmatprep.subr.mxu0 0.0
    %530 = vmatpush1.msra.mxu0 0.0
    %531 = vmatprep.subr.mxu0 0.0
    %532 = vmatpush1.msra.mxu0 0.0
    %533 = vmatprep.subr.mxu0 0.0
    %534 = vmatpush1.msra.mxu0 0.0
    %535 = vmatprep.subr.mxu0 0.0
    %536 = vmatpush1.msra.mxu0 0.0
    %537 = vmatprep.subr.mxu0 0.0
    %538 = vmatpush1.msra.mxu0 0.0
    %539 = vmatprep.subr.mxu0 0.0
    %540 = vmatpush1.msra.mxu0 0.0
    %541 = vmatprep.subr.mxu0 0.0
    %542 = vmatpush1.msra.mxu0 0.0
    %543 = vmatprep.subr.mxu0 0.0
    %544 = vmatpush1.msra.mxu0 0.0
    %545 = vmatprep.subr.mxu0 0.0
    %546 = vmatpush1.msra.mxu0 0.0
    %547 = vmatprep.subr.mxu0 0.0
    %548 = vmatpush1.msra.mxu0 0.0
    %549 = vmatprep.subr.mxu0 0.0
    %550 = vmatpush1.msra.mxu0 0.0
    %551 = vmatprep.subr.mxu0 0.0
    %552 = vmatpush1.msra.mxu0 0.0
    %553 = vmatprep.mubr.f32.mxu0 0.0
    %v554 = vand.u32 %v45, 4294901760
    %v555 = vsub.f32 %v45, %v554
    %556 = vmatmul.mubr.f32.gmra.mrb[0].mxu0 %v555
    %v557 = vpop.f32.mrb[0].mxu0
    %v558 = vadd.f32 %v400, %v557
    %v559 = vpop.f32.mrb[0].mxu0
    %560 = vmatprep.mubr.f32.mxu0 0.0
    %v561 = vand.u32 %v46, 4294901760
    %v562 = vsub.f32 %v46, %v561
    %563 = vmatmul.mubr.f32.gmra.mrb[0].mxu0 %v562
    %v564 = vpop.f32.mrb[0].mxu0
    %v565 = vadd.f32 %v406, %v564
    %v566 = vpop.f32.mrb[0].mxu0
    %567 = vmatprep.mubr.f32.mxu0 0.0
    %v568 = vand.u32 %v47, 4294901760
    %v569 = vsub.f32 %v47, %v568
    %570 = vmatmul.mubr.f32.gmra.mrb[0].mxu0 %v569
    %v571 = vpop.f32.mrb[0].mxu0
    %v572 = vadd.f32 %v412, %v571
    %v573 = vpop.f32.mrb[0].mxu0
    %574 = vmatprep.mubr.f32.mxu0 0.0
    %v575 = vand.u32 %v48, 4294901760
    %v576 = vsub.f32 %v48, %v575
    %577 = vmatmul.mubr.f32.gmra.mrb[0].mxu0 %v576
    %v578 = vpop.f32.mrb[0].mxu0
    %v579 = vadd.f32 %v418, %v578
    %v580 = vpop.f32.mrb[0].mxu0
    %581 = vmatprep.mubr.f32.mxu0 0.0
    %v582 = vand.u32 %v49, 4294901760
    %v583 = vsub.f32 %v49, %v582
    %584 = vmatmul.mubr.f32.gmra.mrb[0].mxu0 %v583
    %v585 = vpop.f32.mrb[0].mxu0
    %v586 = vadd.f32 %v424, %v585
    %v587 = vpop.f32.mrb[0].mxu0
    %588 = vmatprep.mubr.f32.mxu0 0.0
    %v589 = vand.u32 %v50, 4294901760
    %v590 = vsub.f32 %v50, %v589
    %591 = vmatmul.mubr.f32.gmra.mrb[0].mxu0 %v590
    %v592 = vpop.f32.mrb[0].mxu0
    %v593 = vadd.f32 %v430, %v592
    %v594 = vpop.f32.mrb[0].mxu0
    %595 = vmatprep.mubr.f32.mxu0 0.0
    %v596 = vand.u32 %v51, 4294901760
    %v597 = vsub.f32 %v51, %v596
    %598 = vmatmul.mubr.f32.gmra.mrb[0].mxu0 %v597
    %v599 = vpop.f32.mrb[0].mxu0
    %v600 = vadd.f32 %v436, %v599
    %v601 = vpop.f32.mrb[0].mxu0
    %602 = vmatprep.mubr.f32.mxu0 0.0
    %v603 = vand.u32 %v52, 4294901760
    %v604 = vsub.f32 %v52, %v603
    %605 = vmatmul.mubr.f32.gmra.mrb[0].mxu0 %v604
    %v606 = vpop.f32.mrb[0].mxu0
    %v607 = vadd.f32 %v442, %v606
    %v608 = vpop.f32.mrb[0].mxu0
    %609 = vmatprep.mubr.f32.mxu0 0.0
    %v610 = vand.u32 %v53, 4294901760
    %v611 = vsub.f32 %v53, %v610
    %612 = vmatmul.mubr.f32.gmra.mrb[0].mxu0 %v611
    %v613 = vpop.f32.mrb[0].mxu0
    %v614 = vadd.f32 %v448, %v613
    %v615 = vpop.f32.mrb[0].mxu0
    %616 = vmatprep.mubr.f32.mxu0 0.0
    %v617 = vand.u32 %v54, 4294901760
    %v618 = vsub.f32 %v54, %v617
    %619 = vmatmul.mubr.f32.gmra.mrb[0].mxu0 %v618
    %v620 = vpop.f32.mrb[0].mxu0
    %v621 = vadd.f32 %v454, %v620
    %v622 = vpop.f32.mrb[0].mxu0
    %623 = vdwg.mxu0
    %624 = vmatprep.subr.mxu0 0.0
    %v625 = vand.u32 %v55, 4294901760
    %626 = vmatpush1.msra.mxu0 %v625
    %627 = vmatprep.subr.mxu0 0.0
    %v628 = vand.u32 %v56, 4294901760
    %629 = vmatpush1.msra.mxu0 %v628
    %630 = vmatprep.subr.mxu0 0.0
    %v631 = vand.u32 %v57, 4294901760
    %632 = vmatpush1.msra.mxu0 %v631
    %633 = vmatprep.subr.mxu0 0.0
    %v634 = vand.u32 %v58, 4294901760
    %635 = vmatpush1.msra.mxu0 %v634
    %636 = vmatprep.subr.mxu0 0.0
    %v637 = vand.u32 %v59, 4294901760
    %638 = vmatpush1.msra.mxu0 %v637
    %639 = vmatprep.subr.mxu0 0.0
    %v640 = vand.u32 %v60, 4294901760
    %641 = vmatpush1.msra.mxu0 %v640
    %642 = vmatprep.subr.mxu0 0.0
    %v643 = vand.u32 %v61, 4294901760
    %644 = vmatpush1.msra.mxu0 %v643
    %645 = vmatprep.subr.mxu0 0.0
    %v646 = vand.u32 %v62, 4294901760
    %647 = vmatpush1.msra.mxu0 %v646
    %648 = vmatprep.subr.mxu0 0.0
    %v649 = vand.u32 %v63, 4294901760
    %650 = vmatpush1.msra.mxu0 %v649
    %651 = vmatprep.subr.mxu0 0.0
    %v652 = vand.u32 %v64, 4294901760
    %653 = vmatpush1.msra.mxu0 %v652
    %654 = vmatprep.subr.mxu0 0.0
    %v655 = vand.u32 %v65, 4294901760
    %656 = vmatpush1.msra.mxu0 %v655
    %657 = vmatprep.subr.mxu0 0.0
    %v658 = vand.u32 %v66, 4294901760
    %659 = vmatpush1.msra.mxu0 %v658
    %660 = vmatprep.subr.mxu0 0.0
    %v661 = vand.u32 %v67, 4294901760
    %662 = vmatpush1.msra.mxu0 %v661
    %663 = vmatprep.subr.mxu0 0.0
    %v664 = vand.u32 %v68, 4294901760
    %665 = vmatpush1.msra.mxu0 %v664
    %666 = vmatprep.subr.mxu0 0.0
    %v667 = vand.u32 %v69, 4294901760
    %668 = vmatpush1.msra.mxu0 %v667
    %669 = vmatprep.subr.mxu0 0.0
    %v670 = vand.u32 %v70, 4294901760
    %671 = vmatpush1.msra.mxu0 %v670
    %672 = vmatprep.subr.mxu0 0.0
    %673 = vmatpush1.msra.mxu0 0.0
    %674 = vmatprep.subr.mxu0 0.0
    %675 = vmatpush1.msra.mxu0 0.0
    %676 = vmatprep.subr.mxu0 0.0
    %677 = vmatpush1.msra.mxu0 0.0
    %678 = vmatprep.subr.mxu0 0.0
    %679 = vmatpush1.msra.mxu0 0.0
    %680 = vmatprep.subr.mxu0 0.0
    %681 = vmatpush1.msra.mxu0 0.0
    %682 = vmatprep.subr.mxu0 0.0
    %683 = vmatpush1.msra.mxu0 0.0
    %684 = vmatprep.subr.mxu0 0.0
    %685 = vmatpush1.msra.mxu0 0.0
    %686 = vmatprep.subr.mxu0 0.0
    %687 = vmatpush1.msra.mxu0 0.0
    %688 = vmatprep.subr.mxu0 0.0
    %689 = vmatpush1.msra.mxu0 0.0
    %690 = vmatprep.subr.mxu0 0.0
    %691 = vmatpush1.msra.mxu0 0.0
    %692 = vmatprep.subr.mxu0 0.0
    %693 = vmatpush1.msra.mxu0 0.0
    %694 = vmatprep.subr.mxu0 0.0
    %695 = vmatpush1.msra.mxu0 0.0
    %696 = vmatprep.subr.mxu0 0.0
    %697 = vmatpush1.msra.mxu0 0.0
    %698 = vmatprep.subr.mxu0 0.0
    %699 = vmatpush1.msra.mxu0 0.0
    %700 = vmatprep.subr.mxu0 0.0
    %701 = vmatpush1.msra.mxu0 0.0
    %702 = vmatprep.subr.mxu0 0.0
    %703 = vmatpush1.msra.mxu0 0.0
    %704 = vmatprep.mubr.f32.mxu0 0.0
    %v705 = vand.u32 %v45, 4294901760
    %v706 = vsub.f32 %v45, %v705
    %v707 = vand.u32 %v706, 4294901760
    %708 = vmatmul.mubr.f32.gmra.mrb[0].mxu0 %v707
    %v709 = vpop.f32.mrb[0].mxu0
    %v710 = vadd.f32 %v558, %v709
    %v711 = vpop.f32.mrb[0].mxu0
    %712 = vmatprep.mubr.f32.mxu0 0.0
    %v713 = vand.u32 %v46, 4294901760
    %v714 = vsub.f32 %v46, %v713
    %v715 = vand.u32 %v714, 4294901760
    %716 = vmatmul.mubr.f32.gmra.mrb[0].mxu0 %v715
    %v717 = vpop.f32.mrb[0].mxu0
    %v718 = vadd.f32 %v565, %v717
    %v719 = vpop.f32.mrb[0].mxu0
    %720 = vmatprep.mubr.f32.mxu0 0.0
    %v721 = vand.u32 %v47, 4294901760
    %v722 = vsub.f32 %v47, %v721
    %v723 = vand.u32 %v722, 4294901760
    %724 = vmatmul.mubr.f32.gmra.mrb[0].mxu0 %v723
    %v725 = vpop.f32.mrb[0].mxu0
    %v726 = vadd.f32 %v572, %v725
    %v727 = vpop.f32.mrb[0].mxu0
    %728 = vmatprep.mubr.f32.mxu0 0.0
    %v729 = vand.u32 %v48, 4294901760
    %v730 = vsub.f32 %v48, %v729
    %v731 = vand.u32 %v730, 4294901760
    %732 = vmatmul.mubr.f32.gmra.mrb[0].mxu0 %v731
    %v733 = vpop.f32.mrb[0].mxu0
    %v734 = vadd.f32 %v579, %v733
    %v735 = vpop.f32.mrb[0].mxu0
    %736 = vmatprep.mubr.f32.mxu0 0.0
    %v737 = vand.u32 %v49, 4294901760
    %v738 = vsub.f32 %v49, %v737
    %v739 = vand.u32 %v738, 4294901760
    %740 = vmatmul.mubr.f32.gmra.mrb[0].mxu0 %v739
    %v741 = vpop.f32.mrb[0].mxu0
    %v742 = vadd.f32 %v586, %v741
    %v743 = vpop.f32.mrb[0].mxu0
    %744 = vmatprep.mubr.f32.mxu0 0.0
    %v745 = vand.u32 %v50, 4294901760
    %v746 = vsub.f32 %v50, %v745
    %v747 = vand.u32 %v746, 4294901760
    %748 = vmatmul.mubr.f32.gmra.mrb[0].mxu0 %v747
    %v749 = vpop.f32.mrb[0].mxu0
    %v750 = vadd.f32 %v593, %v749
    %v751 = vpop.f32.mrb[0].mxu0
    %752 = vmatprep.mubr.f32.mxu0 0.0
    %v753 = vand.u32 %v51, 4294901760
    %v754 = vsub.f32 %v51, %v753
    %v755 = vand.u32 %v754, 4294901760
    %756 = vmatmul.mubr.f32.gmra.mrb[0].mxu0 %v755
    %v757 = vpop.f32.mrb[0].mxu0
    %v758 = vadd.f32 %v600, %v757
    %v759 = vpop.f32.mrb[0].mxu0
    %760 = vmatprep.mubr.f32.mxu0 0.0
    %v761 = vand.u32 %v52, 4294901760
    %v762 = vsub.f32 %v52, %v761
    %v763 = vand.u32 %v762, 4294901760
    %764 = vmatmul.mubr.f32.gmra.mrb[0].mxu0 %v763
    %v765 = vpop.f32.mrb[0].mxu0
    %v766 = vadd.f32 %v607, %v765
    %v767 = vpop.f32.mrb[0].mxu0
    %768 = vmatprep.mubr.f32.mxu0 0.0
    %v769 = vand.u32 %v53, 4294901760
    %v770 = vsub.f32 %v53, %v769
    %v771 = vand.u32 %v770, 4294901760
    %772 = vmatmul.mubr.f32.gmra.mrb[0].mxu0 %v771
    %v773 = vpop.f32.mrb[0].mxu0
    %v774 = vadd.f32 %v614, %v773
    %v775 = vpop.f32.mrb[0].mxu0
    %776 = vmatprep.mubr.f32.mxu0 0.0
    %v777 = vand.u32 %v54, 4294901760
    %v778 = vsub.f32 %v54, %v777
    %v779 = vand.u32 %v778, 4294901760
    %780 = vmatmul.mubr.f32.gmra.mrb[0].mxu0 %v779
    %v781 = vpop.f32.mrb[0].mxu0
    %v782 = vadd.f32 %v621, %v781
    %v783 = vpop.f32.mrb[0].mxu0
    %784 = vdwg.mxu0
    %785 = vmatprep.subr.mxu0 0.0
    %v786 = vand.u32 %v55, 4294901760
    %v787 = vsub.f32 %v55, %v786
    %v788 = vand.u32 %v787, 4294901760
    %789 = vmatpush1.msra.mxu0 %v788
    %790 = vmatprep.subr.mxu0 0.0
    %v791 = vand.u32 %v56, 4294901760
    %v792 = vsub.f32 %v56, %v791
    %v793 = vand.u32 %v792, 4294901760
    %794 = vmatpush1.msra.mxu0 %v793
    %795 = vmatprep.subr.mxu0 0.0
    %v796 = vand.u32 %v57, 4294901760
    %v797 = vsub.f32 %v57, %v796
    %v798 = vand.u32 %v797, 4294901760
    %799 = vmatpush1.msra.mxu0 %v798
    %800 = vmatprep.subr.mxu0 0.0
    %v801 = vand.u32 %v58, 4294901760
    %v802 = vsub.f32 %v58, %v801
    %v803 = vand.u32 %v802, 4294901760
    %804 = vmatpush1.msra.mxu0 %v803
    %805 = vmatprep.subr.mxu0 0.0
    %v806 = vand.u32 %v59, 4294901760
    %v807 = vsub.f32 %v59, %v806
    %v808 = vand.u32 %v807, 4294901760
    %809 = vmatpush1.msra.mxu0 %v808
    %810 = vmatprep.subr.mxu0 0.0
    %v811 = vand.u32 %v60, 4294901760
    %v812 = vsub.f32 %v60, %v811
    %v813 = vand.u32 %v812, 4294901760
    %814 = vmatpush1.msra.mxu0 %v813
    %815 = vmatprep.subr.mxu0 0.0
    %v816 = vand.u32 %v61, 4294901760
    %v817 = vsub.f32 %v61, %v816
    %v818 = vand.u32 %v817, 4294901760
    %819 = vmatpush1.msra.mxu0 %v818
    %820 = vmatprep.subr.mxu0 0.0
    %v821 = vand.u32 %v62, 4294901760
    %v822 = vsub.f32 %v62, %v821
    %v823 = vand.u32 %v822, 4294901760
    %824 = vmatpush1.msra.mxu0 %v823
    %825 = vmatprep.subr.mxu0 0.0
    %v826 = vand.u32 %v63, 4294901760
    %v827 = vsub.f32 %v63, %v826
    %v828 = vand.u32 %v827, 4294901760
    %829 = vmatpush1.msra.mxu0 %v828
    %830 = vmatprep.subr.mxu0 0.0
    %v831 = vand.u32 %v64, 4294901760
    %v832 = vsub.f32 %v64, %v831
    %v833 = vand.u32 %v832, 4294901760
    %834 = vmatpush1.msra.mxu0 %v833
    %835 = vmatprep.subr.mxu0 0.0
    %v836 = vand.u32 %v65, 4294901760
    %v837 = vsub.f32 %v65, %v836
    %v838 = vand.u32 %v837, 4294901760
    %839 = vmatpush1.msra.mxu0 %v838
    %840 = vmatprep.subr.mxu0 0.0
    %v841 = vand.u32 %v66, 4294901760
    %v842 = vsub.f32 %v66, %v841
    %v843 = vand.u32 %v842, 4294901760
    %844 = vmatpush1.msra.mxu0 %v843
    %845 = vmatprep.subr.mxu0 0.0
    %v846 = vand.u32 %v67, 4294901760
    %v847 = vsub.f32 %v67, %v846
    %v848 = vand.u32 %v847, 4294901760
    %849 = vmatpush1.msra.mxu0 %v848
    %850 = vmatprep.subr.mxu0 0.0
    %v851 = vand.u32 %v68, 4294901760
    %v852 = vsub.f32 %v68, %v851
    %v853 = vand.u32 %v852, 4294901760
    %854 = vmatpush1.msra.mxu0 %v853
    %855 = vmatprep.subr.mxu0 0.0
    %v856 = vand.u32 %v69, 4294901760
    %v857 = vsub.f32 %v69, %v856
    %v858 = vand.u32 %v857, 4294901760
    %859 = vmatpush1.msra.mxu0 %v858
    %860 = vmatprep.subr.mxu0 0.0
    %v861 = vand.u32 %v70, 4294901760
    %v862 = vsub.f32 %v70, %v861
    %v863 = vand.u32 %v862, 4294901760
    %864 = vmatpush1.msra.mxu0 %v863
    %865 = vmatprep.subr.mxu0 0.0
    %866 = vmatpush1.msra.mxu0 0.0
    %867 = vmatprep.subr.mxu0 0.0
    %868 = vmatpush1.msra.mxu0 0.0
    %869 = vmatprep.subr.mxu0 0.0
    %870 = vmatpush1.msra.mxu0 0.0
    %871 = vmatprep.subr.mxu0 0.0
    %872 = vmatpush1.msra.mxu0 0.0
    %873 = vmatprep.subr.mxu0 0.0
    %874 = vmatpush1.msra.mxu0 0.0
    %875 = vmatprep.subr.mxu0 0.0
    %876 = vmatpush1.msra.mxu0 0.0
    %877 = vmatprep.subr.mxu0 0.0
    %878 = vmatpush1.msra.mxu0 0.0
    %879 = vmatprep.subr.mxu0 0.0
    %880 = vmatpush1.msra.mxu0 0.0
    %881 = vmatprep.subr.mxu0 0.0
    %882 = vmatpush1.msra.mxu0 0.0
    %883 = vmatprep.subr.mxu0 0.0
    %884 = vmatpush1.msra.mxu0 0.0
    %885 = vmatprep.subr.mxu0 0.0
    %886 = vmatpush1.msra.mxu0 0.0
    %887 = vmatprep.subr.mxu0 0.0
    %888 = vmatpush1.msra.mxu0 0.0
    %889 = vmatprep.subr.mxu0 0.0
    %890 = vmatpush1.msra.mxu0 0.0
    %891 = vmatprep.subr.mxu0 0.0
    %892 = vmatpush1.msra.mxu0 0.0
    %893 = vmatprep.subr.mxu0 0.0
    %894 = vmatpush1.msra.mxu0 0.0
    %895 = vmatprep.subr.mxu0 0.0
    %896 = vmatpush1.msra.mxu0 0.0
    %897 = vmatprep.mubr.f32.mxu0 0.0
    %v898 = vand.u32 %v45, 4294901760
    %899 = vmatmul.mubr.f32.gmra.mrb[0].mxu0 %v898
    %v900 = vpop.f32.mrb[0].mxu0
    %v901 = vadd.f32 %v710, %v900
    %v902 = vpop.f32.mrb[0].mxu0
    %903 = vmatprep.mubr.f32.mxu0 0.0
    %v904 = vand.u32 %v46, 4294901760
    %905 = vmatmul.mubr.f32.gmra.mrb[0].mxu0 %v904
    %v906 = vpop.f32.mrb[0].mxu0
    %v907 = vadd.f32 %v718, %v906
    %v908 = vpop.f32.mrb[0].mxu0
    %909 = vmatprep.mubr.f32.mxu0 0.0
    %v910 = vand.u32 %v47, 4294901760
    %911 = vmatmul.mubr.f32.gmra.mrb[0].mxu0 %v910
    %v912 = vpop.f32.mrb[0].mxu0
    %v913 = vadd.f32 %v726, %v912
    %v914 = vpop.f32.mrb[0].mxu0
    %915 = vmatprep.mubr.f32.mxu0 0.0
    %v916 = vand.u32 %v48, 4294901760
    %917 = vmatmul.mubr.f32.gmra.mrb[0].mxu0 %v916
    %v918 = vpop.f32.mrb[0].mxu0
    %v919 = vadd.f32 %v734, %v918
    %v920 = vpop.f32.mrb[0].mxu0
    %921 = vmatprep.mubr.f32.mxu0 0.0
    %v922 = vand.u32 %v49, 4294901760
    %923 = vmatmul.mubr.f32.gmra.mrb[0].mxu0 %v922
    %v924 = vpop.f32.mrb[0].mxu0
    %v925 = vadd.f32 %v742, %v924
    %v926 = vpop.f32.mrb[0].mxu0
    %927 = vmatprep.mubr.f32.mxu0 0.0
    %v928 = vand.u32 %v50, 4294901760
    %929 = vmatmul.mubr.f32.gmra.mrb[0].mxu0 %v928
    %v930 = vpop.f32.mrb[0].mxu0
    %v931 = vadd.f32 %v750, %v930
    %v932 = vpop.f32.mrb[0].mxu0
    %933 = vmatprep.mubr.f32.mxu0 0.0
    %v934 = vand.u32 %v51, 4294901760
    %935 = vmatmul.mubr.f32.gmra.mrb[0].mxu0 %v934
    %v936 = vpop.f32.mrb[0].mxu0
    %v937 = vadd.f32 %v758, %v936
    %v938 = vpop.f32.mrb[0].mxu0
    %939 = vmatprep.mubr.f32.mxu0 0.0
    %v940 = vand.u32 %v52, 4294901760
    %941 = vmatmul.mubr.f32.gmra.mrb[0].mxu0 %v940
    %v942 = vpop.f32.mrb[0].mxu0
    %v943 = vadd.f32 %v766, %v942
    %v944 = vpop.f32.mrb[0].mxu0
    %945 = vmatprep.mubr.f32.mxu0 0.0
    %v946 = vand.u32 %v53, 4294901760
    %947 = vmatmul.mubr.f32.gmra.mrb[0].mxu0 %v946
    %v948 = vpop.f32.mrb[0].mxu0
    %v949 = vadd.f32 %v774, %v948
    %v950 = vpop.f32.mrb[0].mxu0
    %951 = vmatprep.mubr.f32.mxu0 0.0
    %v952 = vand.u32 %v54, 4294901760
    %953 = vmatmul.mubr.f32.gmra.mrb[0].mxu0 %v952
    %v954 = vpop.f32.mrb[0].mxu0
    %v955 = vadd.f32 %v782, %v954
    %v956 = vpop.f32.mrb[0].mxu0
    %957 = vdwg.mxu0
    %958 = vmatprep.subr.mxu0 0.0
    %v959 = vand.u32 %v55, 4294901760
    %960 = vmatpush1.msra.mxu0 %v959
    %961 = vmatprep.subr.mxu0 0.0
    %v962 = vand.u32 %v56, 4294901760
    %963 = vmatpush1.msra.mxu0 %v962
    %964 = vmatprep.subr.mxu0 0.0
    %v965 = vand.u32 %v57, 4294901760
    %966 = vmatpush1.msra.mxu0 %v965
    %967 = vmatprep.subr.mxu0 0.0
    %v968 = vand.u32 %v58, 4294901760
    %969 = vmatpush1.msra.mxu0 %v968
    %970 = vmatprep.subr.mxu0 0.0
    %v971 = vand.u32 %v59, 4294901760
    %972 = vmatpush1.msra.mxu0 %v971
    %973 = vmatprep.subr.mxu0 0.0
    %v974 = vand.u32 %v60, 4294901760
    %975 = vmatpush1.msra.mxu0 %v974
    %976 = vmatprep.subr.mxu0 0.0
    %v977 = vand.u32 %v61, 4294901760
    %978 = vmatpush1.msra.mxu0 %v977
    %979 = vmatprep.subr.mxu0 0.0
    %v980 = vand.u32 %v62, 4294901760
    %981 = vmatpush1.msra.mxu0 %v980
    %982 = vmatprep.subr.mxu0 0.0
    %v983 = vand.u32 %v63, 4294901760
    %984 = vmatpush1.msra.mxu0 %v983
    %985 = vmatprep.subr.mxu0 0.0
    %v986 = vand.u32 %v64, 4294901760
    %987 = vmatpush1.msra.mxu0 %v986
    %988 = vmatprep.subr.mxu0 0.0
    %v989 = vand.u32 %v65, 4294901760
    %990 = vmatpush1.msra.mxu0 %v989
    %991 = vmatprep.subr.mxu0 0.0
    %v992 = vand.u32 %v66, 4294901760
    %993 = vmatpush1.msra.mxu0 %v992
    %994 = vmatprep.subr.mxu0 0.0
    %v995 = vand.u32 %v67, 4294901760
    %996 = vmatpush1.msra.mxu0 %v995
    %997 = vmatprep.subr.mxu0 0.0
    %v998 = vand.u32 %v68, 4294901760
    %999 = vmatpush1.msra.mxu0 %v998
    %1000 = vmatprep.subr.mxu0 0.0
    %v1001 = vand.u32 %v69, 4294901760
    %1002 = vmatpush1.msra.mxu0 %v1001
    %1003 = vmatprep.subr.mxu0 0.0
    %v1004 = vand.u32 %v70, 4294901760
    %1005 = vmatpush1.msra.mxu0 %v1004
    %1006 = vmatprep.subr.mxu0 0.0
    %1007 = vmatpush1.msra.mxu0 0.0
    %1008 = vmatprep.subr.mxu0 0.0
    %1009 = vmatpush1.msra.mxu0 0.0
    %1010 = vmatprep.subr.mxu0 0.0
    %1011 = vmatpush1.msra.mxu0 0.0
    %1012 = vmatprep.subr.mxu0 0.0
    %1013 = vmatpush1.msra.mxu0 0.0
    %1014 = vmatprep.subr.mxu0 0.0
    %1015 = vmatpush1.msra.mxu0 0.0
    %1016 = vmatprep.subr.mxu0 0.0
    %1017 = vmatpush1.msra.mxu0 0.0
    %1018 = vmatprep.subr.mxu0 0.0
    %1019 = vmatpush1.msra.mxu0 0.0
    %1020 = vmatprep.subr.mxu0 0.0
    %1021 = vmatpush1.msra.mxu0 0.0
    %1022 = vmatprep.subr.mxu0 0.0
    %1023 = vmatpush1.msra.mxu0 0.0
    %1024 = vmatprep.subr.mxu0 0.0
    %1025 = vmatpush1.msra.mxu0 0.0
    %1026 = vmatprep.subr.mxu0 0.0
    %1027 = vmatpush1.msra.mxu0 0.0
    %1028 = vmatprep.subr.mxu0 0.0
    %1029 = vmatpush1.msra.mxu0 0.0
    %1030 = vmatprep.subr.mxu0 0.0
    %1031 = vmatpush1.msra.mxu0 0.0
    %1032 = vmatprep.subr.mxu0 0.0
    %1033 = vmatpush1.msra.mxu0 0.0
    %1034 = vmatprep.subr.mxu0 0.0
    %1035 = vmatpush1.msra.mxu0 0.0
    %1036 = vmatprep.subr.mxu0 0.0
    %1037 = vmatpush1.msra.mxu0 0.0
    %1038 = vmatprep.mubr.f32.mxu0 0.0
    %v1039 = vand.u32 %v45, 4294901760
    %1040 = vmatmul.mubr.f32.gmra.mrb[0].mxu0 %v1039
    %v1041 = vpop.f32.mrb[0].mxu0
    %v1042 = vadd.f32 %v901, %v1041
    %v1043 = vpop.f32.mrb[0].mxu0
    %1044 = vmatprep.mubr.f32.mxu0 0.0
    %v1045 = vand.u32 %v46, 4294901760
    %1046 = vmatmul.mubr.f32.gmra.mrb[0].mxu0 %v1045
    %v1047 = vpop.f32.mrb[0].mxu0
    %v1048 = vadd.f32 %v907, %v1047
    %v1049 = vpop.f32.mrb[0].mxu0
    %1050 = vmatprep.mubr.f32.mxu0 0.0
    %v1051 = vand.u32 %v47, 4294901760
    %1052 = vmatmul.mubr.f32.gmra.mrb[0].mxu0 %v1051
    %v1053 = vpop.f32.mrb[0].mxu0
    %v1054 = vadd.f32 %v913, %v1053
    %v1055 = vpop.f32.mrb[0].mxu0
    %1056 = vmatprep.mubr.f32.mxu0 0.0
    %v1057 = vand.u32 %v48, 4294901760
    %1058 = vmatmul.mubr.f32.gmra.mrb[0].mxu0 %v1057
    %v1059 = vpop.f32.mrb[0].mxu0
    %v1060 = vadd.f32 %v919, %v1059
    %v1061 = vpop.f32.mrb[0].mxu0
    %1062 = vmatprep.mubr.f32.mxu0 0.0
    %v1063 = vand.u32 %v49, 4294901760
    %1064 = vmatmul.mubr.f32.gmra.mrb[0].mxu0 %v1063
    %v1065 = vpop.f32.mrb[0].mxu0
    %v1066 = vadd.f32 %v925, %v1065
    %v1067 = vpop.f32.mrb[0].mxu0
    %1068 = vmatprep.mubr.f32.mxu0 0.0
    %v1069 = vand.u32 %v50, 4294901760
    %1070 = vmatmul.mubr.f32.gmra.mrb[0].mxu0 %v1069
    %v1071 = vpop.f32.mrb[0].mxu0
    %v1072 = vadd.f32 %v931, %v1071
    %v1073 = vpop.f32.mrb[0].mxu0
    %1074 = vmatprep.mubr.f32.mxu0 0.0
    %v1075 = vand.u32 %v51, 4294901760
    %1076 = vmatmul.mubr.f32.gmra.mrb[0].mxu0 %v1075
    %v1077 = vpop.f32.mrb[0].mxu0
    %v1078 = vadd.f32 %v937, %v1077
    %v1079 = vpop.f32.mrb[0].mxu0
    %1080 = vmatprep.mubr.f32.mxu0 0.0
    %v1081 = vand.u32 %v52, 4294901760
    %1082 = vmatmul.mubr.f32.gmra.mrb[0].mxu0 %v1081
    %v1083 = vpop.f32.mrb[0].mxu0
    %v1084 = vadd.f32 %v943, %v1083
    %v1085 = vpop.f32.mrb[0].mxu0
    %1086 = vmatprep.mubr.f32.mxu0 0.0
    %v1087 = vand.u32 %v53, 4294901760
    %1088 = vmatmul.mubr.f32.gmra.mrb[0].mxu0 %v1087
    %v1089 = vpop.f32.mrb[0].mxu0
    %v1090 = vadd.f32 %v949, %v1089
    %v1091 = vpop.f32.mrb[0].mxu0
    %1092 = vmatprep.mubr.f32.mxu0 0.0
    %v1093 = vand.u32 %v54, 4294901760
    %1094 = vmatmul.mubr.f32.gmra.mrb[0].mxu0 %v1093
    %v1095 = vpop.f32.mrb[0].mxu0
    %v1096 = vadd.f32 %v955, %v1095
    %v1097 = vpop.f32.mrb[0].mxu0
    %1098 = vdwg.mxu0
    %v1099 = vld [vmem:[#allocation4] sm:$0xff]
    %v1100 = vld [vmem:[#allocation4 + $0x8] sm:$0xff]
    %v1101 = vld [vmem:[#allocation4 + $0x10] sm:$0xff]
    %v1102 = vld [vmem:[#allocation4 + $0x18] sm:$0xff]
    %v1103 = vld [vmem:[#allocation4 + $0x20] sm:$0xff]
    %v1104 = vld [vmem:[#allocation4 + $0x28] sm:$0xff]
    %v1105 = vld [vmem:[#allocation4 + $0x30] sm:$0xff]
    %v1106 = vld [vmem:[#allocation4 + $0x38] sm:$0xff]
    %v1107 = vld [vmem:[#allocation4 + $0x40] sm:$0xff]
    %v1108 = vld [vmem:[#allocation4 + $0x48] sm:$0xff]
    %v1109 = vmul.f32 %v1042, %v1099
    %v1110 = vmul.f32 %v1048, %v1100
    %v1111 = vmul.f32 %v1054, %v1101
    %v1112 = vmul.f32 %v1060, %v1102
    %v1113 = vmul.f32 %v1066, %v1103
    %v1114 = vmul.f32 %v1072, %v1104
    %v1115 = vmul.f32 %v1078, %v1105
    %v1116 = vmul.f32 %v1084, %v1106
    %v1117 = vmul.f32 %v1090, %v1107
    %v1118 = vmul.f32 %v1096, %v1108
    %v1119 = vld [vmem:[%s3] sm:$0xff]
    %v1120 = vld [vmem:[%s3 + $0x8] sm:$0xff]
    %v1121 = vld [vmem:[%s3 + $0x10] sm:$0xff]
    %v1122 = vld [vmem:[%s3 + $0x18] sm:$0xff]
    %v1123 = vld [vmem:[%s3 + $0x20] sm:$0xff]
    %v1124 = vld [vmem:[%s3 + $0x28] sm:$0xff]
    %v1125 = vld [vmem:[%s3 + $0x30] sm:$0xff]
    %v1126 = vld [vmem:[%s3 + $0x38] sm:$0xff]
    %v1127 = vld [vmem:[%s3 + $0x40] sm:$0xff]
    %v1128 = vld [vmem:[%s3 + $0x48] sm:$0xff]
    %v1129 = vld [vmem:[%s3 + $0x50] sm:$0xff]
    %v1130 = vld [vmem:[%s3 + $0x58] sm:$0xff]
    %v1131 = vld [vmem:[%s3 + $0x60] sm:$0xff]
    %v1132 = vld [vmem:[%s3 + $0x68] sm:$0xff]
    %v1133 = vld [vmem:[%s3 + $0x70] sm:$0xff]
    %v1134 = vld [vmem:[%s3 + $0x78] sm:$0xff]
    %1135 = vmatprep.subr.mxu0 0.0
    %v1136 = vand.u32 %v1119, 4294901760
    %1137 = vmatpush1.msra.mxu0 %v1136
    %1138 = vmatprep.subr.mxu0 0.0
    %v1139 = vand.u32 %v1120, 4294901760
    %1140 = vmatpush1.msra.mxu0 %v1139
    %1141 = vmatprep.subr.mxu0 0.0
    %v1142 = vand.u32 %v1121, 4294901760
    %1143 = vmatpush1.msra.mxu0 %v1142
    %1144 = vmatprep.subr.mxu0 0.0
    %v1145 = vand.u32 %v1122, 4294901760
    %1146 = vmatpush1.msra.mxu0 %v1145
    %1147 = vmatprep.subr.mxu0 0.0
    %v1148 = vand.u32 %v1123, 4294901760
    %1149 = vmatpush1.msra.mxu0 %v1148
    %1150 = vmatprep.subr.mxu0 0.0
    %v1151 = vand.u32 %v1124, 4294901760
    %1152 = vmatpush1.msra.mxu0 %v1151
    %1153 = vmatprep.subr.mxu0 0.0
    %v1154 = vand.u32 %v1125, 4294901760
    %1155 = vmatpush1.msra.mxu0 %v1154
    %1156 = vmatprep.subr.mxu0 0.0
    %v1157 = vand.u32 %v1126, 4294901760
    %1158 = vmatpush1.msra.mxu0 %v1157
    %1159 = vmatprep.subr.mxu0 0.0
    %v1160 = vand.u32 %v1127, 4294901760
    %1161 = vmatpush1.msra.mxu0 %v1160
    %1162 = vmatprep.subr.mxu0 0.0
    %v1163 = vand.u32 %v1128, 4294901760
    %1164 = vmatpush1.msra.mxu0 %v1163
    %1165 = vmatprep.subr.mxu0 0.0
    %v1166 = vand.u32 %v1129, 4294901760
    %1167 = vmatpush1.msra.mxu0 %v1166
    %1168 = vmatprep.subr.mxu0 0.0
    %v1169 = vand.u32 %v1130, 4294901760
    %1170 = vmatpush1.msra.mxu0 %v1169
    %1171 = vmatprep.subr.mxu0 0.0
    %v1172 = vand.u32 %v1131, 4294901760
    %1173 = vmatpush1.msra.mxu0 %v1172
    %1174 = vmatprep.subr.mxu0 0.0
    %v1175 = vand.u32 %v1132, 4294901760
    %1176 = vmatpush1.msra.mxu0 %v1175
    %1177 = vmatprep.subr.mxu0 0.0
    %v1178 = vand.u32 %v1133, 4294901760
    %1179 = vmatpush1.msra.mxu0 %v1178
    %1180 = vmatprep.subr.mxu0 0.0
    %v1181 = vand.u32 %v1134, 4294901760
    %1182 = vmatpush1.msra.mxu0 %v1181
    %1183 = vmatprep.subr.mxu0 0.0
    %1184 = vmatpush1.msra.mxu0 0.0
    %1185 = vmatprep.subr.mxu0 0.0
    %1186 = vmatpush1.msra.mxu0 0.0
    %1187 = vmatprep.subr.mxu0 0.0
    %1188 = vmatpush1.msra.mxu0 0.0
    %1189 = vmatprep.subr.mxu0 0.0
    %1190 = vmatpush1.msra.mxu0 0.0
    %1191 = vmatprep.subr.mxu0 0.0
    %1192 = vmatpush1.msra.mxu0 0.0
    %1193 = vmatprep.subr.mxu0 0.0
    %1194 = vmatpush1.msra.mxu0 0.0
    %1195 = vmatprep.subr.mxu0 0.0
    %1196 = vmatpush1.msra.mxu0 0.0
    %1197 = vmatprep.subr.mxu0 0.0
    %1198 = vmatpush1.msra.mxu0 0.0
    %1199 = vmatprep.subr.mxu0 0.0
    %1200 = vmatpush1.msra.mxu0 0.0
    %1201 = vmatprep.subr.mxu0 0.0
    %1202 = vmatpush1.msra.mxu0 0.0
    %1203 = vmatprep.subr.mxu0 0.0
    %1204 = vmatpush1.msra.mxu0 0.0
    %1205 = vmatprep.subr.mxu0 0.0
    %1206 = vmatpush1.msra.mxu0 0.0
    %1207 = vmatprep.subr.mxu0 0.0
    %1208 = vmatpush1.msra.mxu0 0.0
    %1209 = vmatprep.subr.mxu0 0.0
    %1210 = vmatpush1.msra.mxu0 0.0
    %1211 = vmatprep.subr.mxu0 0.0
    %1212 = vmatpush1.msra.mxu0 0.0
    %1213 = vmatprep.subr.mxu0 0.0
    %1214 = vmatpush1.msra.mxu0 0.0
    %1215 = vmatprep.mubr.f32.mxu0 0.0
    %v1216 = vand.u32 %v1109, 4294901760
    %v1217 = vsub.f32 %v1109, %v1216
    %v1218 = vand.u32 %v1217, 4294901760
    %v1219 = vsub.f32 %v1217, %v1218
    %v1220 = vand.u32 %v1219, 4294901760
    %1221 = vmatmul.mubr.f32.gmra.mrb[0].mxu0 %v1220
    %v1222 = vpop.f32.mrb[0].mxu0
    %v1223 = vadd.f32 0.0, %v1222
    %v1224 = vpop.f32.mrb[0].mxu0
    %1225 = vmatprep.mubr.f32.mxu0 0.0
    %v1226 = vand.u32 %v1110, 4294901760
    %v1227 = vsub.f32 %v1110, %v1226
    %v1228 = vand.u32 %v1227, 4294901760
    %v1229 = vsub.f32 %v1227, %v1228
    %v1230 = vand.u32 %v1229, 4294901760
    %1231 = vmatmul.mubr.f32.gmra.mrb[0].mxu0 %v1230
    %v1232 = vpop.f32.mrb[0].mxu0
    %v1233 = vadd.f32 0.0, %v1232
    %v1234 = vpop.f32.mrb[0].mxu0
    %1235 = vmatprep.mubr.f32.mxu0 0.0
    %v1236 = vand.u32 %v1111, 4294901760
    %v1237 = vsub.f32 %v1111, %v1236
    %v1238 = vand.u32 %v1237, 4294901760
    %v1239 = vsub.f32 %v1237, %v1238
    %v1240 = vand.u32 %v1239, 4294901760
    %1241 = vmatmul.mubr.f32.gmra.mrb[0].mxu0 %v1240
    %v1242 = vpop.f32.mrb[0].mxu0
    %v1243 = vadd.f32 0.0, %v1242
    %v1244 = vpop.f32.mrb[0].mxu0
    %1245 = vmatprep.mubr.f32.mxu0 0.0
    %v1246 = vand.u32 %v1112, 4294901760
    %v1247 = vsub.f32 %v1112, %v1246
    %v1248 = vand.u32 %v1247, 4294901760
    %v1249 = vsub.f32 %v1247, %v1248
    %v1250 = vand.u32 %v1249, 4294901760
    %1251 = vmatmul.mubr.f32.gmra.mrb[0].mxu0 %v1250
    %v1252 = vpop.f32.mrb[0].mxu0
    %v1253 = vadd.f32 0.0, %v1252
    %v1254 = vpop.f32.mrb[0].mxu0
    %1255 = vmatprep.mubr.f32.mxu0 0.0
    %v1256 = vand.u32 %v1113, 4294901760
    %v1257 = vsub.f32 %v1113, %v1256
    %v1258 = vand.u32 %v1257, 4294901760
    %v1259 = vsub.f32 %v1257, %v1258
    %v1260 = vand.u32 %v1259, 4294901760
    %1261 = vmatmul.mubr.f32.gmra.mrb[0].mxu0 %v1260
    %v1262 = vpop.f32.mrb[0].mxu0
    %v1263 = vadd.f32 0.0, %v1262
    %v1264 = vpop.f32.mrb[0].mxu0
    %1265 = vmatprep.mubr.f32.mxu0 0.0
    %v1266 = vand.u32 %v1114, 4294901760
    %v1267 = vsub.f32 %v1114, %v1266
    %v1268 = vand.u32 %v1267, 4294901760
    %v1269 = vsub.f32 %v1267, %v1268
    %v1270 = vand.u32 %v1269, 4294901760
    %1271 = vmatmul.mubr.f32.gmra.mrb[0].mxu0 %v1270
    %v1272 = vpop.f32.mrb[0].mxu0
    %v1273 = vadd.f32 0.0, %v1272
    %v1274 = vpop.f32.mrb[0].mxu0
    %1275 = vmatprep.mubr.f32.mxu0 0.0
    %v1276 = vand.u32 %v1115, 4294901760
    %v1277 = vsub.f32 %v1115, %v1276
    %v1278 = vand.u32 %v1277, 4294901760
    %v1279 = vsub.f32 %v1277, %v1278
    %v1280 = vand.u32 %v1279, 4294901760
    %1281 = vmatmul.mubr.f32.gmra.mrb[0].mxu0 %v1280
    %v1282 = vpop.f32.mrb[0].mxu0
    %v1283 = vadd.f32 0.0, %v1282
    %v1284 = vpop.f32.mrb[0].mxu0
    %1285 = vmatprep.mubr.f32.mxu0 0.0
    %v1286 = vand.u32 %v1116, 4294901760
    %v1287 = vsub.f32 %v1116, %v1286
    %v1288 = vand.u32 %v1287, 4294901760
    %v1289 = vsub.f32 %v1287, %v1288
    %v1290 = vand.u32 %v1289, 4294901760
    %1291 = vmatmul.mubr.f32.gmra.mrb[0].mxu0 %v1290
    %v1292 = vpop.f32.mrb[0].mxu0
    %v1293 = vadd.f32 0.0, %v1292
    %v1294 = vpop.f32.mrb[0].mxu0
    %1295 = vmatprep.mubr.f32.mxu0 0.0
    %v1296 = vand.u32 %v1117, 4294901760
    %v1297 = vsub.f32 %v1117, %v1296
    %v1298 = vand.u32 %v1297, 4294901760
    %v1299 = vsub.f32 %v1297, %v1298
    %v1300 = vand.u32 %v1299, 4294901760
    %1301 = vmatmul.mubr.f32.gmra.mrb[0].mxu0 %v1300
    %v1302 = vpop.f32.mrb[0].mxu0
    %v1303 = vadd.f32 0.0, %v1302
    %v1304 = vpop.f32.mrb[0].mxu0
    %1305 = vmatprep.mubr.f32.mxu0 0.0
    %v1306 = vand.u32 %v1118, 4294901760
    %v1307 = vsub.f32 %v1118, %v1306
    %v1308 = vand.u32 %v1307, 4294901760
    %v1309 = vsub.f32 %v1307, %v1308
    %v1310 = vand.u32 %v1309, 4294901760
    %1311 = vmatmul.mubr.f32.gmra.mrb[0].mxu0 %v1310
    %v1312 = vpop.f32.mrb[0].mxu0
    %v1313 = vadd.f32 0.0, %v1312
    %v1314 = vpop.f32.mrb[0].mxu0
    %1315 = vdwg.mxu0
    %1316 = vmatprep.subr.mxu0 0.0
    %v1317 = vand.u32 %v1119, 4294901760
    %v1318 = vsub.f32 %v1119, %v1317
    %v1319 = vand.u32 %v1318, 4294901760
    %v1320 = vsub.f32 %v1318, %v1319
    %v1321 = vand.u32 %v1320, 4294901760
    %1322 = vmatpush1.msra.mxu0 %v1321
    %1323 = vmatprep.subr.mxu0 0.0
    %v1324 = vand.u32 %v1120, 4294901760
    %v1325 = vsub.f32 %v1120, %v1324
    %v1326 = vand.u32 %v1325, 4294901760
    %v1327 = vsub.f32 %v1325, %v1326
    %v1328 = vand.u32 %v1327, 4294901760
    %1329 = vmatpush1.msra.mxu0 %v1328
    %1330 = vmatprep.subr.mxu0 0.0
    %v1331 = vand.u32 %v1121, 4294901760
    %v1332 = vsub.f32 %v1121, %v1331
    %v1333 = vand.u32 %v1332, 4294901760
    %v1334 = vsub.f32 %v1332, %v1333
    %v1335 = vand.u32 %v1334, 4294901760
    %1336 = vmatpush1.msra.mxu0 %v1335
    %1337 = vmatprep.subr.mxu0 0.0
    %v1338 = vand.u32 %v1122, 4294901760
    %v1339 = vsub.f32 %v1122, %v1338
    %v1340 = vand.u32 %v1339, 4294901760
    %v1341 = vsub.f32 %v1339, %v1340
    %v1342 = vand.u32 %v1341, 4294901760
    %1343 = vmatpush1.msra.mxu0 %v1342
    %1344 = vmatprep.subr.mxu0 0.0
    %v1345 = vand.u32 %v1123, 4294901760
    %v1346 = vsub.f32 %v1123, %v1345
    %v1347 = vand.u32 %v1346, 4294901760
    %v1348 = vsub.f32 %v1346, %v1347
    %v1349 = vand.u32 %v1348, 4294901760
    %1350 = vmatpush1.msra.mxu0 %v1349
    %1351 = vmatprep.subr.mxu0 0.0
    %v1352 = vand.u32 %v1124, 4294901760
    %v1353 = vsub.f32 %v1124, %v1352
    %v1354 = vand.u32 %v1353, 4294901760
    %v1355 = vsub.f32 %v1353, %v1354
    %v1356 = vand.u32 %v1355, 4294901760
    %1357 = vmatpush1.msra.mxu0 %v1356
    %1358 = vmatprep.subr.mxu0 0.0
    %v1359 = vand.u32 %v1125, 4294901760
    %v1360 = vsub.f32 %v1125, %v1359
    %v1361 = vand.u32 %v1360, 4294901760
    %v1362 = vsub.f32 %v1360, %v1361
    %v1363 = vand.u32 %v1362, 4294901760
    %1364 = vmatpush1.msra.mxu0 %v1363
    %1365 = vmatprep.subr.mxu0 0.0
    %v1366 = vand.u32 %v1126, 4294901760
    %v1367 = vsub.f32 %v1126, %v1366
    %v1368 = vand.u32 %v1367, 4294901760
    %v1369 = vsub.f32 %v1367, %v1368
    %v1370 = vand.u32 %v1369, 4294901760
    %1371 = vmatpush1.msra.mxu0 %v1370
    %1372 = vmatprep.subr.mxu0 0.0
    %v1373 = vand.u32 %v1127, 4294901760
    %v1374 = vsub.f32 %v1127, %v1373
    %v1375 = vand.u32 %v1374, 4294901760
    %v1376 = vsub.f32 %v1374, %v1375
    %v1377 = vand.u32 %v1376, 4294901760
    %1378 = vmatpush1.msra.mxu0 %v1377
    %1379 = vmatprep.subr.mxu0 0.0
    %v1380 = vand.u32 %v1128, 4294901760
    %v1381 = vsub.f32 %v1128, %v1380
    %v1382 = vand.u32 %v1381, 4294901760
    %v1383 = vsub.f32 %v1381, %v1382
    %v1384 = vand.u32 %v1383, 4294901760
    %1385 = vmatpush1.msra.mxu0 %v1384
    %1386 = vmatprep.subr.mxu0 0.0
    %v1387 = vand.u32 %v1129, 4294901760
    %v1388 = vsub.f32 %v1129, %v1387
    %v1389 = vand.u32 %v1388, 4294901760
    %v1390 = vsub.f32 %v1388, %v1389
    %v1391 = vand.u32 %v1390, 4294901760
    %1392 = vmatpush1.msra.mxu0 %v1391
    %1393 = vmatprep.subr.mxu0 0.0
    %v1394 = vand.u32 %v1130, 4294901760
    %v1395 = vsub.f32 %v1130, %v1394
    %v1396 = vand.u32 %v1395, 4294901760
    %v1397 = vsub.f32 %v1395, %v1396
    %v1398 = vand.u32 %v1397, 4294901760
    %1399 = vmatpush1.msra.mxu0 %v1398
    %1400 = vmatprep.subr.mxu0 0.0
    %v1401 = vand.u32 %v1131, 4294901760
    %v1402 = vsub.f32 %v1131, %v1401
    %v1403 = vand.u32 %v1402, 4294901760
    %v1404 = vsub.f32 %v1402, %v1403
    %v1405 = vand.u32 %v1404, 4294901760
    %1406 = vmatpush1.msra.mxu0 %v1405
    %1407 = vmatprep.subr.mxu0 0.0
    %v1408 = vand.u32 %v1132, 4294901760
    %v1409 = vsub.f32 %v1132, %v1408
    %v1410 = vand.u32 %v1409, 4294901760
    %v1411 = vsub.f32 %v1409, %v1410
    %v1412 = vand.u32 %v1411, 4294901760
    %1413 = vmatpush1.msra.mxu0 %v1412
    %1414 = vmatprep.subr.mxu0 0.0
    %v1415 = vand.u32 %v1133, 4294901760
    %v1416 = vsub.f32 %v1133, %v1415
    %v1417 = vand.u32 %v1416, 4294901760
    %v1418 = vsub.f32 %v1416, %v1417
    %v1419 = vand.u32 %v1418, 4294901760
    %1420 = vmatpush1.msra.mxu0 %v1419
    %1421 = vmatprep.subr.mxu0 0.0
    %v1422 = vand.u32 %v1134, 4294901760
    %v1423 = vsub.f32 %v1134, %v1422
    %v1424 = vand.u32 %v1423, 4294901760
    %v1425 = vsub.f32 %v1423, %v1424
    %v1426 = vand.u32 %v1425, 4294901760
    %1427 = vmatpush1.msra.mxu0 %v1426
    %1428 = vmatprep.subr.mxu0 0.0
    %1429 = vmatpush1.msra.mxu0 0.0
    %1430 = vmatprep.subr.mxu0 0.0
    %1431 = vmatpush1.msra.mxu0 0.0
    %1432 = vmatprep.subr.mxu0 0.0
    %1433 = vmatpush1.msra.mxu0 0.0
    %1434 = vmatprep.subr.mxu0 0.0
    %1435 = vmatpush1.msra.mxu0 0.0
    %1436 = vmatprep.subr.mxu0 0.0
    %1437 = vmatpush1.msra.mxu0 0.0
    %1438 = vmatprep.subr.mxu0 0.0
    %1439 = vmatpush1.msra.mxu0 0.0
    %1440 = vmatprep.subr.mxu0 0.0
    %1441 = vmatpush1.msra.mxu0 0.0
    %1442 = vmatprep.subr.mxu0 0.0
    %1443 = vmatpush1.msra.mxu0 0.0
    %1444 = vmatprep.subr.mxu0 0.0
    %1445 = vmatpush1.msra.mxu0 0.0
    %1446 = vmatprep.subr.mxu0 0.0
    %1447 = vmatpush1.msra.mxu0 0.0
    %1448 = vmatprep.subr.mxu0 0.0
    %1449 = vmatpush1.msra.mxu0 0.0
    %1450 = vmatprep.subr.mxu0 0.0
    %1451 = vmatpush1.msra.mxu0 0.0
    %1452 = vmatprep.subr.mxu0 0.0
    %1453 = vmatpush1.msra.mxu0 0.0
    %1454 = vmatprep.subr.mxu0 0.0
    %1455 = vmatpush1.msra.mxu0 0.0
    %1456 = vmatprep.subr.mxu0 0.0
    %1457 = vmatpush1.msra.mxu0 0.0
    %1458 = vmatprep.subr.mxu0 0.0
    %1459 = vmatpush1.msra.mxu0 0.0
    %1460 = vmatprep.mubr.f32.mxu0 0.0
    %v1461 = vand.u32 %v1109, 4294901760
    %1462 = vmatmul.mubr.f32.gmra.mrb[0].mxu0 %v1461
    %v1463 = vpop.f32.mrb[0].mxu0
    %v1464 = vadd.f32 %v1223, %v1463
    %v1465 = vpop.f32.mrb[0].mxu0
    %1466 = vmatprep.mubr.f32.mxu0 0.0
    %v1467 = vand.u32 %v1110, 4294901760
    %1468 = vmatmul.mubr.f32.gmra.mrb[0].mxu0 %v1467
    %v1469 = vpop.f32.mrb[0].mxu0
    %v1470 = vadd.f32 %v1233, %v1469
    %v1471 = vpop.f32.mrb[0].mxu0
    %1472 = vmatprep.mubr.f32.mxu0 0.0
    %v1473 = vand.u32 %v1111, 4294901760
    %1474 = vmatmul.mubr.f32.gmra.mrb[0].mxu0 %v1473
    %v1475 = vpop.f32.mrb[0].mxu0
    %v1476 = vadd.f32 %v1243, %v1475
    %v1477 = vpop.f32.mrb[0].mxu0
    %1478 = vmatprep.mubr.f32.mxu0 0.0
    %v1479 = vand.u32 %v1112, 4294901760
    %1480 = vmatmul.mubr.f32.gmra.mrb[0].mxu0 %v1479
    %v1481 = vpop.f32.mrb[0].mxu0
    %v1482 = vadd.f32 %v1253, %v1481
    %v1483 = vpop.f32.mrb[0].mxu0
    %1484 = vmatprep.mubr.f32.mxu0 0.0
    %v1485 = vand.u32 %v1113, 4294901760
    %1486 = vmatmul.mubr.f32.gmra.mrb[0].mxu0 %v1485
    %v1487 = vpop.f32.mrb[0].mxu0
    %v1488 = vadd.f32 %v1263, %v1487
    %v1489 = vpop.f32.mrb[0].mxu0
    %1490 = vmatprep.mubr.f32.mxu0 0.0
    %v1491 = vand.u32 %v1114, 4294901760
    %1492 = vmatmul.mubr.f32.gmra.mrb[0].mxu0 %v1491
    %v1493 = vpop.f32.mrb[0].mxu0
    %v1494 = vadd.f32 %v1273, %v1493
    %v1495 = vpop.f32.mrb[0].mxu0
    %1496 = vmatprep.mubr.f32.mxu0 0.0
    %v1497 = vand.u32 %v1115, 4294901760
    %1498 = vmatmul.mubr.f32.gmra.mrb[0].mxu0 %v1497
    %v1499 = vpop.f32.mrb[0].mxu0
    %v1500 = vadd.f32 %v1283, %v1499
    %v1501 = vpop.f32.mrb[0].mxu0
    %1502 = vmatprep.mubr.f32.mxu0 0.0
    %v1503 = vand.u32 %v1116, 4294901760
    %1504 = vmatmul.mubr.f32.gmra.mrb[0].mxu0 %v1503
    %v1505 = vpop.f32.mrb[0].mxu0
    %v1506 = vadd.f32 %v1293, %v1505
    %v1507 = vpop.f32.mrb[0].mxu0
    %1508 = vmatprep.mubr.f32.mxu0 0.0
    %v1509 = vand.u32 %v1117, 4294901760
    %1510 = vmatmul.mubr.f32.gmra.mrb[0].mxu0 %v1509
    %v1511 = vpop.f32.mrb[0].mxu0
    %v1512 = vadd.f32 %v1303, %v1511
    %v1513 = vpop.f32.mrb[0].mxu0
    %1514 = vmatprep.mubr.f32.mxu0 0.0
    %v1515 = vand.u32 %v1118, 4294901760
    %1516 = vmatmul.mubr.f32.gmra.mrb[0].mxu0 %v1515
    %v1517 = vpop.f32.mrb[0].mxu0
    %v1518 = vadd.f32 %v1313, %v1517
    %v1519 = vpop.f32.mrb[0].mxu0
    %1520 = vdwg.mxu0
    %1521 = vmatprep.subr.mxu0 0.0
    %v1522 = vand.u32 %v1119, 4294901760
    %v1523 = vsub.f32 %v1119, %v1522
    %1524 = vmatpush1.msra.mxu0 %v1523
    %1525 = vmatprep.subr.mxu0 0.0
    %v1526 = vand.u32 %v1120, 4294901760
    %v1527 = vsub.f32 %v1120, %v1526
    %1528 = vmatpush1.msra.mxu0 %v1527
    %1529 = vmatprep.subr.mxu0 0.0
    %v1530 = vand.u32 %v1121, 4294901760
    %v1531 = vsub.f32 %v1121, %v1530
    %1532 = vmatpush1.msra.mxu0 %v1531
    %1533 = vmatprep.subr.mxu0 0.0
    %v1534 = vand.u32 %v1122, 4294901760
    %v1535 = vsub.f32 %v1122, %v1534
    %1536 = vmatpush1.msra.mxu0 %v1535
    %1537 = vmatprep.subr.mxu0 0.0
    %v1538 = vand.u32 %v1123, 4294901760
    %v1539 = vsub.f32 %v1123, %v1538
    %1540 = vmatpush1.msra.mxu0 %v1539
    %1541 = vmatprep.subr.mxu0 0.0
    %v1542 = vand.u32 %v1124, 4294901760
    %v1543 = vsub.f32 %v1124, %v1542
    %1544 = vmatpush1.msra.mxu0 %v1543
    %1545 = vmatprep.subr.mxu0 0.0
    %v1546 = vand.u32 %v1125, 4294901760
    %v1547 = vsub.f32 %v1125, %v1546
    %1548 = vmatpush1.msra.mxu0 %v1547
    %1549 = vmatprep.subr.mxu0 0.0
    %v1550 = vand.u32 %v1126, 4294901760
    %v1551 = vsub.f32 %v1126, %v1550
    %1552 = vmatpush1.msra.mxu0 %v1551
    %1553 = vmatprep.subr.mxu0 0.0
    %v1554 = vand.u32 %v1127, 4294901760
    %v1555 = vsub.f32 %v1127, %v1554
    %1556 = vmatpush1.msra.mxu0 %v1555
    %1557 = vmatprep.subr.mxu0 0.0
    %v1558 = vand.u32 %v1128, 4294901760
    %v1559 = vsub.f32 %v1128, %v1558
    %1560 = vmatpush1.msra.mxu0 %v1559
    %1561 = vmatprep.subr.mxu0 0.0
    %v1562 = vand.u32 %v1129, 4294901760
    %v1563 = vsub.f32 %v1129, %v1562
    %1564 = vmatpush1.msra.mxu0 %v1563
    %1565 = vmatprep.subr.mxu0 0.0
    %v1566 = vand.u32 %v1130, 4294901760
    %v1567 = vsub.f32 %v1130, %v1566
    %1568 = vmatpush1.msra.mxu0 %v1567
    %1569 = vmatprep.subr.mxu0 0.0
    %v1570 = vand.u32 %v1131, 4294901760
    %v1571 = vsub.f32 %v1131, %v1570
    %1572 = vmatpush1.msra.mxu0 %v1571
    %1573 = vmatprep.subr.mxu0 0.0
    %v1574 = vand.u32 %v1132, 4294901760
    %v1575 = vsub.f32 %v1132, %v1574
    %1576 = vmatpush1.msra.mxu0 %v1575
    %1577 = vmatprep.subr.mxu0 0.0
    %v1578 = vand.u32 %v1133, 4294901760
    %v1579 = vsub.f32 %v1133, %v1578
    %1580 = vmatpush1.msra.mxu0 %v1579
    %1581 = vmatprep.subr.mxu0 0.0
    %v1582 = vand.u32 %v1134, 4294901760
    %v1583 = vsub.f32 %v1134, %v1582
    %1584 = vmatpush1.msra.mxu0 %v1583
    %1585 = vmatprep.subr.mxu0 0.0
    %1586 = vmatpush1.msra.mxu0 0.0
    %1587 = vmatprep.subr.mxu0 0.0
    %1588 = vmatpush1.msra.mxu0 0.0
    %1589 = vmatprep.subr.mxu0 0.0
    %1590 = vmatpush1.msra.mxu0 0.0
    %1591 = vmatprep.subr.mxu0 0.0
    %1592 = vmatpush1.msra.mxu0 0.0
    %1593 = vmatprep.subr.mxu0 0.0
    %1594 = vmatpush1.msra.mxu0 0.0
    %1595 = vmatprep.subr.mxu0 0.0
    %1596 = vmatpush1.msra.mxu0 0.0
    %1597 = vmatprep.subr.mxu0 0.0
    %1598 = vmatpush1.msra.mxu0 0.0
    %1599 = vmatprep.subr.mxu0 0.0
    %1600 = vmatpush1.msra.mxu0 0.0
    %1601 = vmatprep.subr.mxu0 0.0
    %1602 = vmatpush1.msra.mxu0 0.0
    %1603 = vmatprep.subr.mxu0 0.0
    %1604 = vmatpush1.msra.mxu0 0.0
    %1605 = vmatprep.subr.mxu0 0.0
    %1606 = vmatpush1.msra.mxu0 0.0
    %1607 = vmatprep.subr.mxu0 0.0
    %1608 = vmatpush1.msra.mxu0 0.0
    %1609 = vmatprep.subr.mxu0 0.0
    %1610 = vmatpush1.msra.mxu0 0.0
    %1611 = vmatprep.subr.mxu0 0.0
    %1612 = vmatpush1.msra.mxu0 0.0
    %1613 = vmatprep.subr.mxu0 0.0
    %1614 = vmatpush1.msra.mxu0 0.0
    %1615 = vmatprep.subr.mxu0 0.0
    %1616 = vmatpush1.msra.mxu0 0.0
    %1617 = vmatprep.mubr.f32.mxu0 0.0
    %v1618 = vand.u32 %v1109, 4294901760
    %v1619 = vsub.f32 %v1109, %v1618
    %1620 = vmatmul.mubr.f32.gmra.mrb[0].mxu0 %v1619
    %v1621 = vpop.f32.mrb[0].mxu0
    %v1622 = vadd.f32 %v1464, %v1621
    %v1623 = vpop.f32.mrb[0].mxu0
    %1624 = vmatprep.mubr.f32.mxu0 0.0
    %v1625 = vand.u32 %v1110, 4294901760
    %v1626 = vsub.f32 %v1110, %v1625
    %1627 = vmatmul.mubr.f32.gmra.mrb[0].mxu0 %v1626
    %v1628 = vpop.f32.mrb[0].mxu0
    %v1629 = vadd.f32 %v1470, %v1628
    %v1630 = vpop.f32.mrb[0].mxu0
    %1631 = vmatprep.mubr.f32.mxu0 0.0
    %v1632 = vand.u32 %v1111, 4294901760
    %v1633 = vsub.f32 %v1111, %v1632
    %1634 = vmatmul.mubr.f32.gmra.mrb[0].mxu0 %v1633
    %v1635 = vpop.f32.mrb[0].mxu0
    %v1636 = vadd.f32 %v1476, %v1635
    %v1637 = vpop.f32.mrb[0].mxu0
    %1638 = vmatprep.mubr.f32.mxu0 0.0
    %v1639 = vand.u32 %v1112, 4294901760
    %v1640 = vsub.f32 %v1112, %v1639
    %1641 = vmatmul.mubr.f32.gmra.mrb[0].mxu0 %v1640
    %v1642 = vpop.f32.mrb[0].mxu0
    %v1643 = vadd.f32 %v1482, %v1642
    %v1644 = vpop.f32.mrb[0].mxu0
    %1645 = vmatprep.mubr.f32.mxu0 0.0
    %v1646 = vand.u32 %v1113, 4294901760
    %v1647 = vsub.f32 %v1113, %v1646
    %1648 = vmatmul.mubr.f32.gmra.mrb[0].mxu0 %v1647
    %v1649 = vpop.f32.mrb[0].mxu0
    %v1650 = vadd.f32 %v1488, %v1649
    %v1651 = vpop.f32.mrb[0].mxu0
    %1652 = vmatprep.mubr.f32.mxu0 0.0
    %v1653 = vand.u32 %v1114, 4294901760
    %v1654 = vsub.f32 %v1114, %v1653
    %1655 = vmatmul.mubr.f32.gmra.mrb[0].mxu0 %v1654
    %v1656 = vpop.f32.mrb[0].mxu0
    %v1657 = vadd.f32 %v1494, %v1656
    %v1658 = vpop.f32.mrb[0].mxu0
    %1659 = vmatprep.mubr.f32.mxu0 0.0
    %v1660 = vand.u32 %v1115, 4294901760
    %v1661 = vsub.f32 %v1115, %v1660
    %1662 = vmatmul.mubr.f32.gmra.mrb[0].mxu0 %v1661
    %v1663 = vpop.f32.mrb[0].mxu0
    %v1664 = vadd.f32 %v1500, %v1663
    %v1665 = vpop.f32.mrb[0].mxu0
    %1666 = vmatprep.mubr.f32.mxu0 0.0
    %v1667 = vand.u32 %v1116, 4294901760
    %v1668 = vsub.f32 %v1116, %v1667
    %1669 = vmatmul.mubr.f32.gmra.mrb[0].mxu0 %v1668
    %v1670 = vpop.f32.mrb[0].mxu0
    %v1671 = vadd.f32 %v1506, %v1670
    %v1672 = vpop.f32.mrb[0].mxu0
    %1673 = vmatprep.mubr.f32.mxu0 0.0
    %v1674 = vand.u32 %v1117, 4294901760
    %v1675 = vsub.f32 %v1117, %v1674
    %1676 = vmatmul.mubr.f32.gmra.mrb[0].mxu0 %v1675
    %v1677 = vpop.f32.mrb[0].mxu0
    %v1678 = vadd.f32 %v1512, %v1677
    %v1679 = vpop.f32.mrb[0].mxu0
    %1680 = vmatprep.mubr.f32.mxu0 0.0
    %v1681 = vand.u32 %v1118, 4294901760
    %v1682 = vsub.f32 %v1118, %v1681
    %1683 = vmatmul.mubr.f32.gmra.mrb[0].mxu0 %v1682
    %v1684 = vpop.f32.mrb[0].mxu0
    %v1685 = vadd.f32 %v1518, %v1684
    %v1686 = vpop.f32.mrb[0].mxu0
    %1687 = vdwg.mxu0
    %1688 = vmatprep.subr.mxu0 0.0
    %v1689 = vand.u32 %v1119, 4294901760
    %1690 = vmatpush1.msra.mxu0 %v1689
    %1691 = vmatprep.subr.mxu0 0.0
    %v1692 = vand.u32 %v1120, 4294901760
    %1693 = vmatpush1.msra.mxu0 %v1692
    %1694 = vmatprep.subr.mxu0 0.0
    %v1695 = vand.u32 %v1121, 4294901760
    %1696 = vmatpush1.msra.mxu0 %v1695
    %1697 = vmatprep.subr.mxu0 0.0
    %v1698 = vand.u32 %v1122, 4294901760
    %1699 = vmatpush1.msra.mxu0 %v1698
    %1700 = vmatprep.subr.mxu0 0.0
    %v1701 = vand.u32 %v1123, 4294901760
    %1702 = vmatpush1.msra.mxu0 %v1701
    %1703 = vmatprep.subr.mxu0 0.0
    %v1704 = vand.u32 %v1124, 4294901760
    %1705 = vmatpush1.msra.mxu0 %v1704
    %1706 = vmatprep.subr.mxu0 0.0
    %v1707 = vand.u32 %v1125, 4294901760
    %1708 = vmatpush1.msra.mxu0 %v1707
    %1709 = vmatprep.subr.mxu0 0.0
    %v1710 = vand.u32 %v1126, 4294901760
    %1711 = vmatpush1.msra.mxu0 %v1710
    %1712 = vmatprep.subr.mxu0 0.0
    %v1713 = vand.u32 %v1127, 4294901760
    %1714 = vmatpush1.msra.mxu0 %v1713
    %1715 = vmatprep.subr.mxu0 0.0
    %v1716 = vand.u32 %v1128, 4294901760
    %1717 = vmatpush1.msra.mxu0 %v1716
    %1718 = vmatprep.subr.mxu0 0.0
    %v1719 = vand.u32 %v1129, 4294901760
    %1720 = vmatpush1.msra.mxu0 %v1719
    %1721 = vmatprep.subr.mxu0 0.0
    %v1722 = vand.u32 %v1130, 4294901760
    %1723 = vmatpush1.msra.mxu0 %v1722
    %1724 = vmatprep.subr.mxu0 0.0
    %v1725 = vand.u32 %v1131, 4294901760
    %1726 = vmatpush1.msra.mxu0 %v1725
    %1727 = vmatprep.subr.mxu0 0.0
    %v1728 = vand.u32 %v1132, 4294901760
    %1729 = vmatpush1.msra.mxu0 %v1728
    %1730 = vmatprep.subr.mxu0 0.0
    %v1731 = vand.u32 %v1133, 4294901760
    %1732 = vmatpush1.msra.mxu0 %v1731
    %1733 = vmatprep.subr.mxu0 0.0
    %v1734 = vand.u32 %v1134, 4294901760
    %1735 = vmatpush1.msra.mxu0 %v1734
    %1736 = vmatprep.subr.mxu0 0.0
    %1737 = vmatpush1.msra.mxu0 0.0
    %1738 = vmatprep.subr.mxu0 0.0
    %1739 = vmatpush1.msra.mxu0 0.0
    %1740 = vmatprep.subr.mxu0 0.0
    %1741 = vmatpush1.msra.mxu0 0.0
    %1742 = vmatprep.subr.mxu0 0.0
    %1743 = vmatpush1.msra.mxu0 0.0
    %1744 = vmatprep.subr.mxu0 0.0
    %1745 = vmatpush1.msra.mxu0 0.0
    %1746 = vmatprep.subr.mxu0 0.0
    %1747 = vmatpush1.msra.mxu0 0.0
    %1748 = vmatprep.subr.mxu0 0.0
    %1749 = vmatpush1.msra.mxu0 0.0
    %1750 = vmatprep.subr.mxu0 0.0
    %1751 = vmatpush1.msra.mxu0 0.0
    %1752 = vmatprep.subr.mxu0 0.0
    %1753 = vmatpush1.msra.mxu0 0.0
    %1754 = vmatprep.subr.mxu0 0.0
    %1755 = vmatpush1.msra.mxu0 0.0
    %1756 = vmatprep.subr.mxu0 0.0
    %1757 = vmatpush1.msra.mxu0 0.0
    %1758 = vmatprep.subr.mxu0 0.0
    %1759 = vmatpush1.msra.mxu0 0.0
    %1760 = vmatprep.subr.mxu0 0.0
    %1761 = vmatpush1.msra.mxu0 0.0
    %1762 = vmatprep.subr.mxu0 0.0
    %1763 = vmatpush1.msra.mxu0 0.0
    %1764 = vmatprep.subr.mxu0 0.0
    %1765 = vmatpush1.msra.mxu0 0.0
    %1766 = vmatprep.subr.mxu0 0.0
    %1767 = vmatpush1.msra.mxu0 0.0
    %1768 = vmatprep.mubr.f32.mxu0 0.0
    %v1769 = vand.u32 %v1109, 4294901760
    %v1770 = vsub.f32 %v1109, %v1769
    %v1771 = vand.u32 %v1770, 4294901760
    %1772 = vmatmul.mubr.f32.gmra.mrb[0].mxu0 %v1771
    %v1773 = vpop.f32.mrb[0].mxu0
    %v1774 = vadd.f32 %v1622, %v1773
    %v1775 = vpop.f32.mrb[0].mxu0
    %1776 = vmatprep.mubr.f32.mxu0 0.0
    %v1777 = vand.u32 %v1110, 4294901760
    %v1778 = vsub.f32 %v1110, %v1777
    %v1779 = vand.u32 %v1778, 4294901760
    %1780 = vmatmul.mubr.f32.gmra.mrb[0].mxu0 %v1779
    %v1781 = vpop.f32.mrb[0].mxu0
    %v1782 = vadd.f32 %v1629, %v1781
    %v1783 = vpop.f32.mrb[0].mxu0
    %1784 = vmatprep.mubr.f32.mxu0 0.0
    %v1785 = vand.u32 %v1111, 4294901760
    %v1786 = vsub.f32 %v1111, %v1785
    %v1787 = vand.u32 %v1786, 4294901760
    %1788 = vmatmul.mubr.f32.gmra.mrb[0].mxu0 %v1787
    %v1789 = vpop.f32.mrb[0].mxu0
    %v1790 = vadd.f32 %v1636, %v1789
    %v1791 = vpop.f32.mrb[0].mxu0
    %1792 = vmatprep.mubr.f32.mxu0 0.0
    %v1793 = vand.u32 %v1112, 4294901760
    %v1794 = vsub.f32 %v1112, %v1793
    %v1795 = vand.u32 %v1794, 4294901760
    %1796 = vmatmul.mubr.f32.gmra.mrb[0].mxu0 %v1795
    %v1797 = vpop.f32.mrb[0].mxu0
    %v1798 = vadd.f32 %v1643, %v1797
    %v1799 = vpop.f32.mrb[0].mxu0
    %1800 = vmatprep.mubr.f32.mxu0 0.0
    %v1801 = vand.u32 %v1113, 4294901760
    %v1802 = vsub.f32 %v1113, %v1801
    %v1803 = vand.u32 %v1802, 4294901760
    %1804 = vmatmul.mubr.f32.gmra.mrb[0].mxu0 %v1803
    %v1805 = vpop.f32.mrb[0].mxu0
    %v1806 = vadd.f32 %v1650, %v1805
    %v1807 = vpop.f32.mrb[0].mxu0
    %1808 = vmatprep.mubr.f32.mxu0 0.0
    %v1809 = vand.u32 %v1114, 4294901760
    %v1810 = vsub.f32 %v1114, %v1809
    %v1811 = vand.u32 %v1810, 4294901760
    %1812 = vmatmul.mubr.f32.gmra.mrb[0].mxu0 %v1811
    %v1813 = vpop.f32.mrb[0].mxu0
    %v1814 = vadd.f32 %v1657, %v1813
    %v1815 = vpop.f32.mrb[0].mxu0
    %1816 = vmatprep.mubr.f32.mxu0 0.0
    %v1817 = vand.u32 %v1115, 4294901760
    %v1818 = vsub.f32 %v1115, %v1817
    %v1819 = vand.u32 %v1818, 4294901760
    %1820 = vmatmul.mubr.f32.gmra.mrb[0].mxu0 %v1819
    %v1821 = vpop.f32.mrb[0].mxu0
    %v1822 = vadd.f32 %v1664, %v1821
    %v1823 = vpop.f32.mrb[0].mxu0
    %1824 = vmatprep.mubr.f32.mxu0 0.0
    %v1825 = vand.u32 %v1116, 4294901760
    %v1826 = vsub.f32 %v1116, %v1825
    %v1827 = vand.u32 %v1826, 4294901760
    %1828 = vmatmul.mubr.f32.gmra.mrb[0].mxu0 %v1827
    %v1829 = vpop.f32.mrb[0].mxu0
    %v1830 = vadd.f32 %v1671, %v1829
    %v1831 = vpop.f32.mrb[0].mxu0
    %1832 = vmatprep.mubr.f32.mxu0 0.0
    %v1833 = vand.u32 %v1117, 4294901760
    %v1834 = vsub.f32 %v1117, %v1833
    %v1835 = vand.u32 %v1834, 4294901760
    %1836 = vmatmul.mubr.f32.gmra.mrb[0].mxu0 %v1835
    %v1837 = vpop.f32.mrb[0].mxu0
    %v1838 = vadd.f32 %v1678, %v1837
    %v1839 = vpop.f32.mrb[0].mxu0
    %1840 = vmatprep.mubr.f32.mxu0 0.0
    %v1841 = vand.u32 %v1118, 4294901760
    %v1842 = vsub.f32 %v1118, %v1841
    %v1843 = vand.u32 %v1842, 4294901760
    %1844 = vmatmul.mubr.f32.gmra.mrb[0].mxu0 %v1843
    %v1845 = vpop.f32.mrb[0].mxu0
    %v1846 = vadd.f32 %v1685, %v1845
    %v1847 = vpop.f32.mrb[0].mxu0
    %1848 = vdwg.mxu0
    %1849 = vmatprep.subr.mxu0 0.0
    %v1850 = vand.u32 %v1119, 4294901760
    %v1851 = vsub.f32 %v1119, %v1850
    %v1852 = vand.u32 %v1851, 4294901760
    %1853 = vmatpush1.msra.mxu0 %v1852
    %1854 = vmatprep.subr.mxu0 0.0
    %v1855 = vand.u32 %v1120, 4294901760
    %v1856 = vsub.f32 %v1120, %v1855
    %v1857 = vand.u32 %v1856, 4294901760
    %1858 = vmatpush1.msra.mxu0 %v1857
    %1859 = vmatprep.subr.mxu0 0.0
    %v1860 = vand.u32 %v1121, 4294901760
    %v1861 = vsub.f32 %v1121, %v1860
    %v1862 = vand.u32 %v1861, 4294901760
    %1863 = vmatpush1.msra.mxu0 %v1862
    %1864 = vmatprep.subr.mxu0 0.0
    %v1865 = vand.u32 %v1122, 4294901760
    %v1866 = vsub.f32 %v1122, %v1865
    %v1867 = vand.u32 %v1866, 4294901760
    %1868 = vmatpush1.msra.mxu0 %v1867
    %1869 = vmatprep.subr.mxu0 0.0
    %v1870 = vand.u32 %v1123, 4294901760
    %v1871 = vsub.f32 %v1123, %v1870
    %v1872 = vand.u32 %v1871, 4294901760
    %1873 = vmatpush1.msra.mxu0 %v1872
    %1874 = vmatprep.subr.mxu0 0.0
    %v1875 = vand.u32 %v1124, 4294901760
    %v1876 = vsub.f32 %v1124, %v1875
    %v1877 = vand.u32 %v1876, 4294901760
    %1878 = vmatpush1.msra.mxu0 %v1877
    %1879 = vmatprep.subr.mxu0 0.0
    %v1880 = vand.u32 %v1125, 4294901760
    %v1881 = vsub.f32 %v1125, %v1880
    %v1882 = vand.u32 %v1881, 4294901760
    %1883 = vmatpush1.msra.mxu0 %v1882
    %1884 = vmatprep.subr.mxu0 0.0
    %v1885 = vand.u32 %v1126, 4294901760
    %v1886 = vsub.f32 %v1126, %v1885
    %v1887 = vand.u32 %v1886, 4294901760
    %1888 = vmatpush1.msra.mxu0 %v1887
    %1889 = vmatprep.subr.mxu0 0.0
    %v1890 = vand.u32 %v1127, 4294901760
    %v1891 = vsub.f32 %v1127, %v1890
    %v1892 = vand.u32 %v1891, 4294901760
    %1893 = vmatpush1.msra.mxu0 %v1892
    %1894 = vmatprep.subr.mxu0 0.0
    %v1895 = vand.u32 %v1128, 4294901760
    %v1896 = vsub.f32 %v1128, %v1895
    %v1897 = vand.u32 %v1896, 4294901760
    %1898 = vmatpush1.msra.mxu0 %v1897
    %1899 = vmatprep.subr.mxu0 0.0
    %v1900 = vand.u32 %v1129, 4294901760
    %v1901 = vsub.f32 %v1129, %v1900
    %v1902 = vand.u32 %v1901, 4294901760
    %1903 = vmatpush1.msra.mxu0 %v1902
    %1904 = vmatprep.subr.mxu0 0.0
    %v1905 = vand.u32 %v1130, 4294901760
    %v1906 = vsub.f32 %v1130, %v1905
    %v1907 = vand.u32 %v1906, 4294901760
    %1908 = vmatpush1.msra.mxu0 %v1907
    %1909 = vmatprep.subr.mxu0 0.0
    %v1910 = vand.u32 %v1131, 4294901760
    %v1911 = vsub.f32 %v1131, %v1910
    %v1912 = vand.u32 %v1911, 4294901760
    %1913 = vmatpush1.msra.mxu0 %v1912
    %1914 = vmatprep.subr.mxu0 0.0
    %v1915 = vand.u32 %v1132, 4294901760
    %v1916 = vsub.f32 %v1132, %v1915
    %v1917 = vand.u32 %v1916, 4294901760
    %1918 = vmatpush1.msra.mxu0 %v1917
    %1919 = vmatprep.subr.mxu0 0.0
    %v1920 = vand.u32 %v1133, 4294901760
    %v1921 = vsub.f32 %v1133, %v1920
    %v1922 = vand.u32 %v1921, 4294901760
    %1923 = vmatpush1.msra.mxu0 %v1922
    %1924 = vmatprep.subr.mxu0 0.0
    %v1925 = vand.u32 %v1134, 4294901760
    %v1926 = vsub.f32 %v1134, %v1925
    %v1927 = vand.u32 %v1926, 4294901760
    %1928 = vmatpush1.msra.mxu0 %v1927
    %1929 = vmatprep.subr.mxu0 0.0
    %1930 = vmatpush1.msra.mxu0 0.0
    %1931 = vmatprep.subr.mxu0 0.0
    %1932 = vmatpush1.msra.mxu0 0.0
    %1933 = vmatprep.subr.mxu0 0.0
    %1934 = vmatpush1.msra.mxu0 0.0
    %1935 = vmatprep.subr.mxu0 0.0
    %1936 = vmatpush1.msra.mxu0 0.0
    %1937 = vmatprep.subr.mxu0 0.0
    %1938 = vmatpush1.msra.mxu0 0.0
    %1939 = vmatprep.subr.mxu0 0.0
    %1940 = vmatpush1.msra.mxu0 0.0
    %1941 = vmatprep.subr.mxu0 0.0
    %1942 = vmatpush1.msra.mxu0 0.0
    %1943 = vmatprep.subr.mxu0 0.0
    %1944 = vmatpush1.msra.mxu0 0.0
    %1945 = vmatprep.subr.mxu0 0.0
    %1946 = vmatpush1.msra.mxu0 0.0
    %1947 = vmatprep.subr.mxu0 0.0
    %1948 = vmatpush1.msra.mxu0 0.0
    %1949 = vmatprep.subr.mxu0 0.0
    %1950 = vmatpush1.msra.mxu0 0.0
    %1951 = vmatprep.subr.mxu0 0.0
    %1952 = vmatpush1.msra.mxu0 0.0
    %1953 = vmatprep.subr.mxu0 0.0
    %1954 = vmatpush1.msra.mxu0 0.0
    %1955 = vmatprep.subr.mxu0 0.0
    %1956 = vmatpush1.msra.mxu0 0.0
    %1957 = vmatprep.subr.mxu0 0.0
    %1958 = vmatpush1.msra.mxu0 0.0
    %1959 = vmatprep.subr.mxu0 0.0
    %1960 = vmatpush1.msra.mxu0 0.0
    %1961 = vmatprep.mubr.f32.mxu0 0.0
    %v1962 = vand.u32 %v1109, 4294901760
    %1963 = vmatmul.mubr.f32.gmra.mrb[0].mxu0 %v1962
    %v1964 = vpop.f32.mrb[0].mxu0
    %v1965 = vadd.f32 %v1774, %v1964
    %v1966 = vpop.f32.mrb[0].mxu0
    %1967 = vmatprep.mubr.f32.mxu0 0.0
    %v1968 = vand.u32 %v1110, 4294901760
    %1969 = vmatmul.mubr.f32.gmra.mrb[0].mxu0 %v1968
    %v1970 = vpop.f32.mrb[0].mxu0
    %v1971 = vadd.f32 %v1782, %v1970
    %v1972 = vpop.f32.mrb[0].mxu0
    %1973 = vmatprep.mubr.f32.mxu0 0.0
    %v1974 = vand.u32 %v1111, 4294901760
    %1975 = vmatmul.mubr.f32.gmra.mrb[0].mxu0 %v1974
    %v1976 = vpop.f32.mrb[0].mxu0
    %v1977 = vadd.f32 %v1790, %v1976
    %v1978 = vpop.f32.mrb[0].mxu0
    %1979 = vmatprep.mubr.f32.mxu0 0.0
    %v1980 = vand.u32 %v1112, 4294901760
    %1981 = vmatmul.mubr.f32.gmra.mrb[0].mxu0 %v1980
    %v1982 = vpop.f32.mrb[0].mxu0
    %v1983 = vadd.f32 %v1798, %v1982
    %v1984 = vpop.f32.mrb[0].mxu0
    %1985 = vmatprep.mubr.f32.mxu0 0.0
    %v1986 = vand.u32 %v1113, 4294901760
    %1987 = vmatmul.mubr.f32.gmra.mrb[0].mxu0 %v1986
    %v1988 = vpop.f32.mrb[0].mxu0
    %v1989 = vadd.f32 %v1806, %v1988
    %v1990 = vpop.f32.mrb[0].mxu0
    %1991 = vmatprep.mubr.f32.mxu0 0.0
    %v1992 = vand.u32 %v1114, 4294901760
    %1993 = vmatmul.mubr.f32.gmra.mrb[0].mxu0 %v1992
    %v1994 = vpop.f32.mrb[0].mxu0
    %v1995 = vadd.f32 %v1814, %v1994
    %v1996 = vpop.f32.mrb[0].mxu0
    %1997 = vmatprep.mubr.f32.mxu0 0.0
    %v1998 = vand.u32 %v1115, 4294901760
    %1999 = vmatmul.mubr.f32.gmra.mrb[0].mxu0 %v1998
    %v2000 = vpop.f32.mrb[0].mxu0
    %v2001 = vadd.f32 %v1822, %v2000
    %v2002 = vpop.f32.mrb[0].mxu0
    %2003 = vmatprep.mubr.f32.mxu0 0.0
    %v2004 = vand.u32 %v1116, 4294901760
    %2005 = vmatmul.mubr.f32.gmra.mrb[0].mxu0 %v2004
    %v2006 = vpop.f32.mrb[0].mxu0
    %v2007 = vadd.f32 %v1830, %v2006
    %v2008 = vpop.f32.mrb[0].mxu0
    %2009 = vmatprep.mubr.f32.mxu0 0.0
    %v2010 = vand.u32 %v1117, 4294901760
    %2011 = vmatmul.mubr.f32.gmra.mrb[0].mxu0 %v2010
    %v2012 = vpop.f32.mrb[0].mxu0
    %v2013 = vadd.f32 %v1838, %v2012
    %v2014 = vpop.f32.mrb[0].mxu0
    %2015 = vmatprep.mubr.f32.mxu0 0.0
    %v2016 = vand.u32 %v1118, 4294901760
    %2017 = vmatmul.mubr.f32.gmra.mrb[0].mxu0 %v2016
    %v2018 = vpop.f32.mrb[0].mxu0
    %v2019 = vadd.f32 %v1846, %v2018
    %v2020 = vpop.f32.mrb[0].mxu0
    %2021 = vdwg.mxu0
    %2022 = vmatprep.subr.mxu0 0.0
    %v2023 = vand.u32 %v1119, 4294901760
    %2024 = vmatpush1.msra.mxu0 %v2023
    %2025 = vmatprep.subr.mxu0 0.0
    %v2026 = vand.u32 %v1120, 4294901760
    %2027 = vmatpush1.msra.mxu0 %v2026
    %2028 = vmatprep.subr.mxu0 0.0
    %v2029 = vand.u32 %v1121, 4294901760
    %2030 = vmatpush1.msra.mxu0 %v2029
    %2031 = vmatprep.subr.mxu0 0.0
    %v2032 = vand.u32 %v1122, 4294901760
    %2033 = vmatpush1.msra.mxu0 %v2032
    %2034 = vmatprep.subr.mxu0 0.0
    %v2035 = vand.u32 %v1123, 4294901760
    %2036 = vmatpush1.msra.mxu0 %v2035
    %2037 = vmatprep.subr.mxu0 0.0
    %v2038 = vand.u32 %v1124, 4294901760
    %2039 = vmatpush1.msra.mxu0 %v2038
    %2040 = vmatprep.subr.mxu0 0.0
    %v2041 = vand.u32 %v1125, 4294901760
    %2042 = vmatpush1.msra.mxu0 %v2041
    %2043 = vmatprep.subr.mxu0 0.0
    %v2044 = vand.u32 %v1126, 4294901760
    %2045 = vmatpush1.msra.mxu0 %v2044
    %2046 = vmatprep.subr.mxu0 0.0
    %v2047 = vand.u32 %v1127, 4294901760
    %2048 = vmatpush1.msra.mxu0 %v2047
    %2049 = vmatprep.subr.mxu0 0.0
    %v2050 = vand.u32 %v1128, 4294901760
    %2051 = vmatpush1.msra.mxu0 %v2050
    %2052 = vmatprep.subr.mxu0 0.0
    %v2053 = vand.u32 %v1129, 4294901760
    %2054 = vmatpush1.msra.mxu0 %v2053
    %2055 = vmatprep.subr.mxu0 0.0
    %v2056 = vand.u32 %v1130, 4294901760
    %2057 = vmatpush1.msra.mxu0 %v2056
    %2058 = vmatprep.subr.mxu0 0.0
    %v2059 = vand.u32 %v1131, 4294901760
    %2060 = vmatpush1.msra.mxu0 %v2059
    %2061 = vmatprep.subr.mxu0 0.0
    %v2062 = vand.u32 %v1132, 4294901760
    %2063 = vmatpush1.msra.mxu0 %v2062
    %2064 = vmatprep.subr.mxu0 0.0
    %v2065 = vand.u32 %v1133, 4294901760
    %2066 = vmatpush1.msra.mxu0 %v2065
    %2067 = vmatprep.subr.mxu0 0.0
    %v2068 = vand.u32 %v1134, 4294901760
    %2069 = vmatpush1.msra.mxu0 %v2068
    %2070 = vmatprep.subr.mxu0 0.0
    %2071 = vmatpush1.msra.mxu0 0.0
    %2072 = vmatprep.subr.mxu0 0.0
    %2073 = vmatpush1.msra.mxu0 0.0
    %2074 = vmatprep.subr.mxu0 0.0
    %2075 = vmatpush1.msra.mxu0 0.0
    %2076 = vmatprep.subr.mxu0 0.0
    %2077 = vmatpush1.msra.mxu0 0.0
    %2078 = vmatprep.subr.mxu0 0.0
    %2079 = vmatpush1.msra.mxu0 0.0
    %2080 = vmatprep.subr.mxu0 0.0
    %2081 = vmatpush1.msra.mxu0 0.0
    %2082 = vmatprep.subr.mxu0 0.0
    %2083 = vmatpush1.msra.mxu0 0.0
    %2084 = vmatprep.subr.mxu0 0.0
    %2085 = vmatpush1.msra.mxu0 0.0
    %2086 = vmatprep.subr.mxu0 0.0
    %2087 = vmatpush1.msra.mxu0 0.0
    %2088 = vmatprep.subr.mxu0 0.0
    %2089 = vmatpush1.msra.mxu0 0.0
    %2090 = vmatprep.subr.mxu0 0.0
    %2091 = vmatpush1.msra.mxu0 0.0
    %2092 = vmatprep.subr.mxu0 0.0
    %2093 = vmatpush1.msra.mxu0 0.0
    %2094 = vmatprep.subr.mxu0 0.0
    %2095 = vmatpush1.msra.mxu0 0.0
    %2096 = vmatprep.subr.mxu0 0.0
    %2097 = vmatpush1.msra.mxu0 0.0
    %2098 = vmatprep.subr.mxu0 0.0
    %2099 = vmatpush1.msra.mxu0 0.0
    %2100 = vmatprep.subr.mxu0 0.0
    %2101 = vmatpush1.msra.mxu0 0.0
    %2102 = vmatprep.mubr.f32.mxu0 0.0
    %v2103 = vand.u32 %v1109, 4294901760
    %2104 = vmatmul.mubr.f32.gmra.mrb[0].mxu0 %v2103
    %v2105 = vpop.f32.mrb[0].mxu0
    %v2106 = vadd.f32 %v1965, %v2105
    %v2107 = vpop.f32.mrb[0].mxu0
    %2108 = vmatprep.mubr.f32.mxu0 0.0
    %v2109 = vand.u32 %v1110, 4294901760
    %2110 = vmatmul.mubr.f32.gmra.mrb[0].mxu0 %v2109
    %v2111 = vpop.f32.mrb[0].mxu0
    %v2112 = vadd.f32 %v1971, %v2111
    %v2113 = vpop.f32.mrb[0].mxu0
    %2114 = vmatprep.mubr.f32.mxu0 0.0
    %v2115 = vand.u32 %v1111, 4294901760
    %2116 = vmatmul.mubr.f32.gmra.mrb[0].mxu0 %v2115
    %v2117 = vpop.f32.mrb[0].mxu0
    %v2118 = vadd.f32 %v1977, %v2117
    %v2119 = vpop.f32.mrb[0].mxu0
    %2120 = vmatprep.mubr.f32.mxu0 0.0
    %v2121 = vand.u32 %v1112, 4294901760
    %2122 = vmatmul.mubr.f32.gmra.mrb[0].mxu0 %v2121
    %v2123 = vpop.f32.mrb[0].mxu0
    %v2124 = vadd.f32 %v1983, %v2123
    %v2125 = vpop.f32.mrb[0].mxu0
    %2126 = vmatprep.mubr.f32.mxu0 0.0
    %v2127 = vand.u32 %v1113, 4294901760
    %2128 = vmatmul.mubr.f32.gmra.mrb[0].mxu0 %v2127
    %v2129 = vpop.f32.mrb[0].mxu0
    %v2130 = vadd.f32 %v1989, %v2129
    %v2131 = vpop.f32.mrb[0].mxu0
    %2132 = vmatprep.mubr.f32.mxu0 0.0
    %v2133 = vand.u32 %v1114, 4294901760
    %2134 = vmatmul.mubr.f32.gmra.mrb[0].mxu0 %v2133
    %v2135 = vpop.f32.mrb[0].mxu0
    %v2136 = vadd.f32 %v1995, %v2135
    %v2137 = vpop.f32.mrb[0].mxu0
    %2138 = vmatprep.mubr.f32.mxu0 0.0
    %v2139 = vand.u32 %v1115, 4294901760
    %2140 = vmatmul.mubr.f32.gmra.mrb[0].mxu0 %v2139
    %v2141 = vpop.f32.mrb[0].mxu0
    %v2142 = vadd.f32 %v2001, %v2141
    %v2143 = vpop.f32.mrb[0].mxu0
    %2144 = vmatprep.mubr.f32.mxu0 0.0
    %v2145 = vand.u32 %v1116, 4294901760
    %2146 = vmatmul.mubr.f32.gmra.mrb[0].mxu0 %v2145
    %v2147 = vpop.f32.mrb[0].mxu0
    %v2148 = vadd.f32 %v2007, %v2147
    %v2149 = vpop.f32.mrb[0].mxu0
    %2150 = vmatprep.mubr.f32.mxu0 0.0
    %v2151 = vand.u32 %v1117, 4294901760
    %2152 = vmatmul.mubr.f32.gmra.mrb[0].mxu0 %v2151
    %v2153 = vpop.f32.mrb[0].mxu0
    %v2154 = vadd.f32 %v2013, %v2153
    %v2155 = vpop.f32.mrb[0].mxu0
    %2156 = vmatprep.mubr.f32.mxu0 0.0
    %v2157 = vand.u32 %v1118, 4294901760
    %2158 = vmatmul.mubr.f32.gmra.mrb[0].mxu0 %v2157
    %v2159 = vpop.f32.mrb[0].mxu0
    %v2160 = vadd.f32 %v2019, %v2159
    %v2161 = vpop.f32.mrb[0].mxu0
    %2162 = vdwg.mxu0
    %vm2163 = vcmask 31744
    %2164 = vst.msk [vmem:[%s4] sm:$0xff] %vm2163, %v2106
    %2165 = vst.msk [vmem:[%s4 + $0x8] sm:$0xff] %vm2163, %v2112
    %2166 = vst.msk [vmem:[%s4 + $0x10] sm:$0xff] %vm2163, %v2118
    %2167 = vst.msk [vmem:[%s4 + $0x18] sm:$0xff] %vm2163, %v2124
    %2168 = vst.msk [vmem:[%s4 + $0x20] sm:$0xff] %vm2163, %v2130
    %2169 = vst.msk [vmem:[%s4 + $0x28] sm:$0xff] %vm2163, %v2136
    %2170 = vst.msk [vmem:[%s4 + $0x30] sm:$0xff] %vm2163, %v2142
    %2171 = vst.msk [vmem:[%s4 + $0x38] sm:$0xff] %vm2163, %v2148
    %2172 = vst.msk [vmem:[%s4 + $0x40] sm:$0xff] %vm2163, %v2154
    %2173 = vst.msk [vmem:[%s4 + $0x48] sm:$0xff] %vm2163, %v2160
    // Predicated region
    $region26: #{tpu_custom_call.1} parent=1 // pred_check
      _
    $region27: #{tpu_custom_call.1} parent=1 // pred_check_branch
      %2175 = sbr.rel (0) target = $region29
    $region28: #{tpu_custom_call.1} parent=1 // pred_region
      _
    $region29: #{tpu_custom_call.1} parent=1 // pred_fallthru
      _
    // Predicated region
    $region30: #{tpu_custom_call.1} parent=1 // pred_check
      _
    $region31: #{tpu_custom_call.1} parent=1 // pred_check_branch
      %2177 = sbr.rel (0) target = $region33
    $region32: #{tpu_custom_call.1} parent=1 // pred_region
      _
    $region33: #{tpu_custom_call.1} parent=1 // pred_fallthru
      _
    %2178 = vsyncpa [#allocation3], 1
    %2179 = vsyncpa [#allocation5], 1

</llo_original>
